<compile_context>
chip_gen: v5e
topology: v5e:2x2
jax: 0.10.0
libtpu: 0.0.40
codegen_flags: <defaults>
</compile_context>

<pallas_src>
import math
import functools

import jax
import jax.numpy as jnp
from jax.experimental import pallas as pl
from jax.experimental.pallas import tpu as pltpu

EPS = 1e-5          # PyTorch BatchNorm2d default eps
_ROW_TILE = 256     # M-tile (multiple of 8), small enough for v7x's 64 MiB VMEM
_VMEM_LIMIT = 32 * 1024 * 1024


def _round_up(x, m):
    return (x + m - 1) // m * m


def _pad_rows(x, m_pad):
    m = x.shape[0]
    return x if m_pad == m else jnp.pad(x, ((0, m_pad - m), (0, 0)))


# ----------------------------- Pallas kernels -----------------------------

def _matmul_kernel(x_ref, w_ref, o_ref):
    # plain tiled matmul (in_fc Linear, no bias): bf16 MXU inputs, f32 accumulate
    o_ref[...] = jnp.dot(x_ref[...].astype(jnp.bfloat16), w_ref[...],
                         preferred_element_type=jnp.float32)


def _affine_relu_matmul_kernel(x_ref, s_ref, b_ref, w_ref, o_ref):
    # previous layer's BatchNorm (folded to scale/shift) + ReLU as an f32 prologue,
    # then bf16 tap-major ConvTranspose matmul with f32 accumulation.
    x = jnp.maximum(x_ref[...] * s_ref[...] + b_ref[...], 0.0)
    o_ref[...] = jnp.dot(x.astype(jnp.bfloat16), w_ref[...],
                         preferred_element_type=jnp.float32)


def _stats_kernel(x_ref, sum_ref, sq_ref):
    # per-column sum / sum-of-squares, accumulated across the row grid (reduction axis).
    # TODO(synk): at much larger M the axis-0 (sublane/XLU) reduce could be moved to a
    # ones-vector MXU matmul if the XLU becomes the binding slot.
    @pl.when(pl.program_id(0) == 0)
    def _():
        sum_ref[...] = jnp.zeros_like(sum_ref)
        sq_ref[...] = jnp.zeros_like(sq_ref)
    x = x_ref[...]
    sum_ref[...] += jnp.sum(x, axis=0, keepdims=True)
    sq_ref[...] += jnp.sum(x * x, axis=0, keepdims=True)


def _bias_tanh_kernel(x_ref, b_ref, o_ref):
    # output conv bias + tanh epilogue (f32)
    o_ref[...] = jnp.tanh(x_ref[...] + b_ref[...])


# ----------------------------- tiled wrappers -----------------------------

def _tiled_matmul(x, w, scale=None, shift=None):
    """x: (M, K) f32, w: (K, Ncols) bf16 with Ncols % 128 == 0. Returns (M, Ncols) f32.
    If scale/shift given, applies relu(x*scale + shift) per-column-of-K before the dot."""
    m, k = x.shape
    ncols = w.shape[1]
    tm = min(_ROW_TILE, _round_up(m, 8))
    m_pad = _round_up(m, tm)
    xp = _pad_rows(x, m_pad)
    grid = (m_pad // tm,)
    cost = pl.CostEstimate(flops=2 * m_pad * k * ncols, transcendentals=0,
                           bytes_accessed=xp.size * 4 + w.size * 2 + m_pad * ncols * 4)
    cp = pltpu.CompilerParams(dimension_semantics=("parallel",),
                              vmem_limit_bytes=_VMEM_LIMIT)
    if scale is None:
        y = pl.pallas_call(
            _matmul_kernel,
            out_shape=jax.ShapeDtypeStruct((m_pad, ncols), jnp.float32),
            grid=grid,
            in_specs=[pl.BlockSpec((tm, k), lambda i: (i, 0)),
                      pl.BlockSpec((k, ncols), lambda i: (0, 0))],
            out_specs=pl.BlockSpec((tm, ncols), lambda i: (i, 0)),
            compiler_params=cp, cost_estimate=cost,
        )(xp, w)
    else:
        y = pl.pallas_call(
            _affine_relu_matmul_kernel,
            out_shape=jax.ShapeDtypeStruct((m_pad, ncols), jnp.float32),
            grid=grid,
            in_specs=[pl.BlockSpec((tm, k), lambda i: (i, 0)),
                      pl.BlockSpec((1, k), lambda i: (0, 0)),
                      pl.BlockSpec((1, k), lambda i: (0, 0)),
                      pl.BlockSpec((k, ncols), lambda i: (0, 0))],
            out_specs=pl.BlockSpec((tm, ncols), lambda i: (i, 0)),
            compiler_params=cp, cost_estimate=cost,
        )(xp, scale.reshape(1, k), shift.reshape(1, k), w)
    return y[:m]


def _bn_stats(x2d, c, count):
    """x2d: (R, K*c) f32 with channel-minor columns. Returns per-channel (mean, biased var)."""
    r, cols = x2d.shape
    tm = min(_ROW_TILE, _round_up(r, 8))
    r_pad = _round_up(r, tm)
    xp = _pad_rows(x2d, r_pad)                      # zero rows contribute 0 to both sums
    s, sq = pl.pallas_call(
        _stats_kernel,
        out_shape=(jax.ShapeDtypeStruct((1, cols), jnp.float32),
                   jax.ShapeDtypeStruct((1, cols), jnp.float32)),
        grid=(r_pad // tm,),
        in_specs=[pl.BlockSpec((tm, cols), lambda i: (i, 0))],
        out_specs=(pl.BlockSpec((1, cols), lambda i: (0, 0)),
                   pl.BlockSpec((1, cols), lambda i: (0, 0))),
        compiler_params=pltpu.CompilerParams(dimension_semantics=("arbitrary",),
                                             vmem_limit_bytes=_VMEM_LIMIT),
    )(xp)
    s = s.reshape(-1, c).sum(axis=0)
    sq = sq.reshape(-1, c).sum(axis=0)
    mean = s / count
    var = jnp.maximum(sq / count - mean * mean, 0.0)
    return mean, var


def _bias_tanh(x2d, bias_row):
    r, cols = x2d.shape
    tm = min(_ROW_TILE, _round_up(r, 8))
    r_pad = _round_up(r, tm)
    xp = _pad_rows(x2d, r_pad)
    y = pl.pallas_call(
        _bias_tanh_kernel,
        out_shape=jax.ShapeDtypeStruct((r_pad, cols), jnp.float32),
        grid=(r_pad // tm,),
        in_specs=[pl.BlockSpec((tm, cols), lambda i: (i, 0)),
                  pl.BlockSpec((1, cols), lambda i: (0, 0))],
        out_specs=pl.BlockSpec((tm, cols), lambda i: (i, 0)),
        compiler_params=pltpu.CompilerParams(dimension_semantics=("parallel",),
                                             vmem_limit_bytes=_VMEM_LIMIT),
    )(xp, bias_row.reshape(1, cols))
    return y[:r]


# ---------------------- ConvTranspose2d(4,2,1) pieces ----------------------

def _col2im_2x(y, n, ih, iw, c_out):
    """y: (n*ih*iw, 16*c_out) tap-major (ky, kx, co). Returns (n, 2ih, 2iw, c_out) NHWC,
    i.e. out[n, 2iy-1+ky, 2ix-1+kx, co] += y[n,iy,ix,ky,kx,co] with p=1 border trimming."""
    y6 = y.reshape(n, ih, iw, 4, 4, c_out)
    zero_row = jnp.zeros((n, 1, iw, 4, c_out), y.dtype)
    even_y = y6[:, :, :, 1] + jnp.concatenate([zero_row, y6[:, :-1, :, 3]], axis=1)
    odd_y = y6[:, :, :, 2] + jnp.concatenate([y6[:, 1:, :, 0], zero_row], axis=1)
    z = jnp.stack([even_y, odd_y], axis=2).reshape(n, 2 * ih, iw, 4, c_out)
    zero_col = jnp.zeros((n, 2 * ih, 1, c_out), y.dtype)
    even_x = z[:, :, :, 1] + jnp.concatenate([zero_col, z[:, :, :-1, 3]], axis=2)
    odd_x = z[:, :, :, 2] + jnp.concatenate([z[:, :, 1:, 0], zero_col], axis=2)
    return jnp.stack([even_x, odd_x], axis=3).reshape(n, 2 * ih, 2 * iw, c_out)


def _pad_cols(w, mult=128):
    k, ncol = w.shape
    ncol_pad = _round_up(ncol, mult)
    return w if ncol_pad == ncol else jnp.pad(w, ((0, 0), (0, ncol_pad - ncol)))


def _prep_fc_weight(w_fc, c0, s):
    # PyTorch Linear weight (F=c0*s*s, L), F index = c*s*s + sy*s + sx
    # -> (L, s*s*c0) with columns ordered (sy, sx, c)  == flattened NHWC output
    l = w_fc.shape[1]
    w = w_fc.reshape(c0, s, s, l).transpose(1, 2, 0, 3).reshape(s * s * c0, l).T
    return _pad_cols(w).astype(jnp.bfloat16)


def _prep_convt_weight(w):
    # PyTorch ConvTranspose2d weight (C_in, C_out, 4, 4) -> tap-major (C_in, 16*C_out),
    # columns ordered (ky, kx, co), padded to a multiple of 128 lanes.
    c_in, c_out = w.shape[0], w.shape[1]
    wt = jnp.transpose(w, (0, 2, 3, 1)).reshape(c_in, 16 * c_out)
    return _pad_cols(wt).astype(jnp.bfloat16)


# ------------------------------ Decoder forward ------------------------------

def decoder_forward(prep, z, *, base_ch, out_ch, num_layers, s):
    n = z.shape[0]
    c0 = base_ch * 2 ** num_layers

    # in_fc: Linear (matmul kernel) -> BatchNorm+ReLU folded into the next conv's prologue
    y = _tiled_matmul(z, prep["w_fc"])[:, : s * s * c0]            # (N, s*s*C0)  NHWC-flat
    mean, var = _bn_stats(y.reshape(n * s, s * c0), c0, n * s * s)
    scale = prep["fc_gamma"] * jax.lax.rsqrt(var + EPS)
    shift = prep["fc_beta"] - mean * scale

    x = y.reshape(n * s * s, c0)                                   # rows = (n, iy, ix)
    ih = iw = s
    for j, (wt, gamma, beta) in enumerate(prep["layers"]):
        c_out_l = base_ch * 2 ** (num_layers - 1 - j)
        yy = _tiled_matmul(x, wt, scale, shift)[:, : 16 * c_out_l]
        conv = _col2im_2x(yy, n, ih, iw, c_out_l)                  # (N, 2ih, 2iw, C_out)
        ih, iw = 2 * ih, 2 * iw
        mean, var = _bn_stats(conv.reshape(n * ih, iw * c_out_l), c_out_l, n * ih * iw)
        scale = gamma * jax.lax.rsqrt(var + EPS)
        shift = beta - mean * scale
        x = conv.reshape(n * ih * iw, c_out_l)

    # output ConvTranspose2d (with bias) + tanh; last hidden BN+ReLU folded into its prologue
    yy = _tiled_matmul(x, prep["w_out"], scale, shift)[:, : 16 * out_ch]
    conv = _col2im_2x(yy, n, ih, iw, out_ch)
    oh, ow = 2 * ih, 2 * iw
    out = _bias_tanh(conv.reshape(n * oh, ow * out_ch), jnp.tile(prep["b_out"], ow))
    out = out.reshape(n, oh, ow, out_ch)
    return jnp.transpose(out, (0, 3, 1, 2))                        # NCHW at module boundary


# ------------------------------ Params ------------------------------
# TODO(synk): BatchNorm running-stat updates are a training-time side effect only; they do
# not affect the (training-mode) forward output and are not modeled.

def init_decoder_params(key, out_ch, base_ch, latent_dim, image_res):
    num_layers = max(math.ceil(math.log(image_res, 2)) - 3, 3)
    s = image_res // 2 ** (num_layers + 1)
    c0 = base_ch * 2 ** num_layers

    keys = iter(jax.random.split(key, 5 + 3 * num_layers))
    params = {}
    # PyTorch layouts: Linear weight (out_features, in_features); ConvT weight (Cin, Cout, 4, 4)
    params["w_fc"] = 0.1 * jax.random.normal(next(keys), (c0 * s * s, latent_dim), jnp.float32)
    params["fc_gamma"] = 1.0 + 0.1 * jax.random.normal(next(keys), (c0,), jnp.float32)
    params["fc_beta"] = 0.1 * jax.random.normal(next(keys), (c0,), jnp.float32)
    layers = []
    for i in range(num_layers, 0, -1):
        cin, cout = base_ch * 2 ** i, base_ch * 2 ** (i - 1)
        w = 0.1 * jax.random.normal(next(keys), (cin, cout, 4, 4), jnp.float32)
        g = 1.0 + 0.1 * jax.random.normal(next(keys), (cout,), jnp.float32)
        b = 0.1 * jax.random.normal(next(keys), (cout,), jnp.float32)
        layers.append((w, g, b))
    params["layers"] = layers
    params["w_out"] = 0.1 * jax.random.normal(next(keys), (base_ch, out_ch, 4, 4), jnp.float32)
    params["b_out"] = 0.1 * jax.random.normal(next(keys), (out_ch,), jnp.float32)
    return params, num_layers, s


def prepare_params(params, base_ch, num_layers, s):
    c0 = base_ch * 2 ** num_layers
    return {
        "w_fc": _prep_fc_weight(params["w_fc"], c0, s),
        "fc_gamma": params["fc_gamma"], "fc_beta": params["fc_beta"],
        "layers": [(_prep_convt_weight(w), g, b) for (w, g, b) in params["layers"]],
        "w_out": _prep_convt_weight(params["w_out"]),
        "b_out": params["b_out"],
    }


# --------------------------------- main ---------------------------------

if __name__ == "__main__":
    out_ch, base_ch, latent_dim, image_res = 3, 4, 16, 32
    batch = 2

    key = jax.random.PRNGKey(0)
    pkey, zkey = jax.random.split(key)
    params, num_layers, spatial_size = init_decoder_params(
        pkey, out_ch, base_ch, latent_dim, image_res)
    prep = prepare_params(params, base_ch, num_layers, spatial_size)
    z = jax.random.normal(zkey, (batch, latent_dim), jnp.float32)

    fwd = jax.jit(functools.partial(decoder_forward, base_ch=base_ch, out_ch=out_ch,
                                    num_layers=num_layers, s=spatial_size))
    out = jax.block_until_ready(fwd(prep, z))

    assert out.shape == (batch, out_ch, image_res, image_res), out.shape
    assert bool(jnp.all(jnp.isfinite(out)))
    assert bool(jnp.all(jnp.abs(out) <= 1.0))  # tanh range
    print("KERNEL_OK")
</pallas_src>

<mosaic_0001>
module attributes {stable_mosaic.version = 11 : i64} {
  func.func @_matmul_kernel(%arg0: i32, %arg1: memref<8x16xf32, #tpu.memory_space<vmem>>, %arg2: memref<16x128xbf16, #tpu.memory_space<vmem>>, %arg3: memref<8x128xf32, #tpu.memory_space<vmem>>) attributes {dimension_semantics = [#tpu.dimension_semantics<parallel>], iteration_bounds = array<i64: 1>, scalar_prefetch = 0 : i64, scratch_operands = 0 : i64, tpu.core_type = #tpu.core_type<tc>, window_params = [{transform_indices = @transform_0, window_bounds = array<i64: 8, 16>}, {pipeline_mode = #tpu.pipeline_mode<synchronous>, transform_indices = @transform_1, window_bounds = array<i64: 16, 128>}, {transform_indices = @transform_2, window_bounds = array<i64: 8, 128>}]} {
    %c0 = arith.constant 0 : index
    %c0_0 = arith.constant 0 : index
    %0 = vector.load %arg1[%c0, %c0_0] : memref<8x16xf32, #tpu.memory_space<vmem>>, vector<8x16xf32>
    %1 = arith.truncf %0 : vector<8x16xf32> to vector<8x16xbf16>
    %c0_1 = arith.constant 0 : index
    %c0_2 = arith.constant 0 : index
    %2 = vector.load %arg2[%c0_1, %c0_2] : memref<16x128xbf16, #tpu.memory_space<vmem>>, vector<16x128xbf16>
    %cst = arith.constant dense<0.000000e+00> : vector<8x128xf32>
    %3 = tpu.matmul %1, %2, %cst {dimension_numbers = #tpu.dot_dimension_numbers<[1], [0], [0], [1], [0, 0, 1, 1], [], []>} : vector<8x16xbf16>, vector<16x128xbf16>, vector<8x128xf32> -> vector<8x128xf32>
    %c0_3 = arith.constant 0 : index
    %c0_4 = arith.constant 0 : index
    %4 = vector.load %arg3[%c0_3, %c0_4] : memref<8x128xf32, #tpu.memory_space<vmem>>, vector<8x128xf32>
    tpu.vector_store %arg3[%c0_3, %c0_4], %3 {strides = array<i32>} : memref<8x128xf32, #tpu.memory_space<vmem>>, vector<8x128xf32>,
    return
  }
  func.func @transform_0(%arg0: i32) -> (i32, i32) {
    %c0_i32 = arith.constant 0 : i32
    %c0_i32_0 = arith.constant 0 : i32
    return %arg0, %c0_i32 : i32, i32
  }
  func.func @transform_1(%arg0: i32) -> (i32, i32) {
    %c0_i32 = arith.constant 0 : i32
    %c0_i32_0 = arith.constant 0 : i32
    %c0_i32_1 = arith.constant 0 : i32
    return %c0_i32, %c0_i32_0 : i32, i32
  }
  func.func @transform_2(%arg0: i32) -> (i32, i32) {
    %c0_i32 = arith.constant 0 : i32
    %c0_i32_0 = arith.constant 0 : i32
    return %arg0, %c0_i32 : i32, i32
  }
}

module attributes {stable_mosaic.version = 11 : i64} {
  func.func @_stats_kernel(%arg0: i32, %arg1: memref<8x64xf32, #tpu.memory_space<vmem>>, %arg2: memref<1x64xf32, #tpu.memory_space<vmem>>, %arg3: memref<1x64xf32, #tpu.memory_space<vmem>>) attributes {dimension_semantics = [#tpu.dimension_semantics<arbitrary>], iteration_bounds = array<i64: 1>, scalar_prefetch = 0 : i64, scratch_operands = 0 : i64, tpu.core_type = #tpu.core_type<tc>, window_params = [{transform_indices = @transform_0, window_bounds = array<i64: 8, 64>}, {pipeline_mode = #tpu.pipeline_mode<synchronous>, transform_indices = @transform_1, window_bounds = array<i64: 1, 64>}, {pipeline_mode = #tpu.pipeline_mode<synchronous>, transform_indices = @transform_2, window_bounds = array<i64: 1, 64>}]} {
    %c0_i32 = arith.constant 0 : i32
    %0 = arith.cmpi eq, %arg0, %c0_i32 : i32
    %1 = arith.extui %0 : i1 to i32
    %c0_i32_0 = arith.constant 0 : i32
    %2 = arith.cmpi ne, %1, %c0_i32_0 : i32
    scf.if %2 {
      %cst_11 = arith.constant 0.000000e+00 : f32
      %15 = vector.broadcast %cst_11 : f32 to vector<1x64xf32>
      %c0_12 = arith.constant 0 : index
      %c0_13 = arith.constant 0 : index
      %16 = vector.load %arg2[%c0_12, %c0_13] : memref<1x64xf32, #tpu.memory_space<vmem>>, vector<1x64xf32>
      tpu.vector_store %arg2[%c0_12, %c0_13], %15 {strides = array<i32>} : memref<1x64xf32, #tpu.memory_space<vmem>>, vector<1x64xf32>,
      %cst_14 = arith.constant 0.000000e+00 : f32
      %17 = vector.broadcast %cst_14 : f32 to vector<1x64xf32>
      %c0_15 = arith.constant 0 : index
      %c0_16 = arith.constant 0 : index
      %18 = vector.load %arg3[%c0_15, %c0_16] : memref<1x64xf32, #tpu.memory_space<vmem>>, vector<1x64xf32>
      tpu.vector_store %arg3[%c0_15, %c0_16], %17 {strides = array<i32>} : memref<1x64xf32, #tpu.memory_space<vmem>>, vector<1x64xf32>,
    } else {
    }
    %c0 = arith.constant 0 : index
    %c0_1 = arith.constant 0 : index
    %3 = vector.load %arg1[%c0, %c0_1] : memref<8x64xf32, #tpu.memory_space<vmem>>, vector<8x64xf32>
    %c0_2 = arith.constant 0 : index
    %c0_3 = arith.constant 0 : index
    %4 = vector.load %arg2[%c0_2, %c0_3] : memref<1x64xf32, #tpu.memory_space<vmem>>, vector<1x64xf32>
    %cst = arith.constant dense<0.000000e+00> : vector<64xf32>
    %5 = vector.multi_reduction <add>, %3, %cst [0] : vector<8x64xf32> to vector<64xf32>
    %6 = vector.shape_cast %5 : vector<64xf32> to vector<1x64xf32>
    %7 = arith.addf %4, %6 : vector<1x64xf32>
    %c0_4 = arith.constant 0 : index
    %c0_5 = arith.constant 0 : index
    %8 = vector.load %arg2[%c0_4, %c0_5] : memref<1x64xf32, #tpu.memory_space<vmem>>, vector<1x64xf32>
    tpu.vector_store %arg2[%c0_4, %c0_5], %7 {strides = array<i32>} : memref<1x64xf32, #tpu.memory_space<vmem>>, vector<1x64xf32>,
    %c0_6 = arith.constant 0 : index
    %c0_7 = arith.constant 0 : index
    %9 = vector.load %arg3[%c0_6, %c0_7] : memref<1x64xf32, #tpu.memory_space<vmem>>, vector<1x64xf32>
    %10 = arith.mulf %3, %3 : vector<8x64xf32>
    %cst_8 = arith.constant dense<0.000000e+00> : vector<64xf32>
    %11 = vector.multi_reduction <add>, %10, %cst_8 [0] : vector<8x64xf32> to vector<64xf32>
    %12 = vector.shape_cast %11 : vector<64xf32> to vector<1x64xf32>
    %13 = arith.addf %9, %12 : vector<1x64xf32>
    %c0_9 = arith.constant 0 : index
    %c0_10 = arith.constant 0 : index
    %14 = vector.load %arg3[%c0_9, %c0_10] : memref<1x64xf32, #tpu.memory_space<vmem>>, vector<1x64xf32>
    tpu.vector_store %arg3[%c0_9, %c0_10], %13 {strides = array<i32>} : memref<1x64xf32, #tpu.memory_space<vmem>>, vector<1x64xf32>,
    return
  }
  func.func @transform_0(%arg0: i32) -> (i32, i32) {
    %c0_i32 = arith.constant 0 : i32
    %c0_i32_0 = arith.constant 0 : i32
    return %arg0, %c0_i32 : i32, i32
  }
  func.func @transform_1(%arg0: i32) -> (i32, i32) {
    %c0_i32 = arith.constant 0 : i32
    %c0_i32_0 = arith.constant 0 : i32
    %c0_i32_1 = arith.constant 0 : i32
    return %c0_i32, %c0_i32_0 : i32, i32
  }
  func.func @transform_2(%arg0: i32) -> (i32, i32) {
    %c0_i32 = arith.constant 0 : i32
    %c0_i32_0 = arith.constant 0 : i32
    %c0_i32_1 = arith.constant 0 : i32
    return %c0_i32, %c0_i32_0 : i32, i32
  }
}

module attributes {stable_mosaic.version = 11 : i64} {
  func.func @_affine_relu_matmul_kernel(%arg0: i32, %arg1: memref<8x32xf32, #tpu.memory_space<vmem>>, %arg2: memref<1x32xf32, #tpu.memory_space<vmem>>, %arg3: memref<1x32xf32, #tpu.memory_space<vmem>>, %arg4: memref<32x256xbf16, #tpu.memory_space<vmem>>, %arg5: memref<8x256xf32, #tpu.memory_space<vmem>>) attributes {dimension_semantics = [#tpu.dimension_semantics<parallel>], iteration_bounds = array<i64: 1>, scalar_prefetch = 0 : i64, scratch_operands = 0 : i64, tpu.core_type = #tpu.core_type<tc>, window_params = [{transform_indices = @transform_0, window_bounds = array<i64: 8, 32>}, {pipeline_mode = #tpu.pipeline_mode<synchronous>, transform_indices = @transform_1, window_bounds = array<i64: 1, 32>}, {pipeline_mode = #tpu.pipeline_mode<synchronous>, transform_indices = @transform_2, window_bounds = array<i64: 1, 32>}, {pipeline_mode = #tpu.pipeline_mode<synchronous>, transform_indices = @transform_3, window_bounds = array<i64: 32, 256>}, {transform_indices = @transform_4, window_bounds = array<i64: 8, 256>}]} {
    %c0 = arith.constant 0 : index
    %c0_0 = arith.constant 0 : index
    %0 = vector.load %arg1[%c0, %c0_0] : memref<8x32xf32, #tpu.memory_space<vmem>>, vector<8x32xf32>
    %c0_1 = arith.constant 0 : index
    %c0_2 = arith.constant 0 : index
    %1 = vector.load %arg2[%c0_1, %c0_2] : memref<1x32xf32, #tpu.memory_space<vmem>>, vector<1x32xf32>
    %2 = vector.broadcast %1 : vector<1x32xf32> to vector<8x32xf32>
    %3 = arith.mulf %0, %2 : vector<8x32xf32>
    %c0_3 = arith.constant 0 : index
    %c0_4 = arith.constant 0 : index
    %4 = vector.load %arg3[%c0_3, %c0_4] : memref<1x32xf32, #tpu.memory_space<vmem>>, vector<1x32xf32>
    %5 = vector.broadcast %4 : vector<1x32xf32> to vector<8x32xf32>
    %6 = arith.addf %3, %5 : vector<8x32xf32>
    %cst = arith.constant 0.000000e+00 : f32
    %7 = vector.broadcast %cst : f32 to vector<8x32xf32>
    %8 = arith.maximumf %6, %7 : vector<8x32xf32>
    %9 = arith.truncf %8 : vector<8x32xf32> to vector<8x32xbf16>
    %c0_5 = arith.constant 0 : index
    %c0_6 = arith.constant 0 : index
    %10 = vector.load %arg4[%c0_5, %c0_6] : memref<32x256xbf16, #tpu.memory_space<vmem>>, vector<32x256xbf16>
    %cst_7 = arith.constant dense<0.000000e+00> : vector<8x256xf32>
    %11 = tpu.matmul %9, %10, %cst_7 {dimension_numbers = #tpu.dot_dimension_numbers<[1], [0], [0], [1], [0, 0, 1, 1], [], []>} : vector<8x32xbf16>, vector<32x256xbf16>, vector<8x256xf32> -> vector<8x256xf32>
    %c0_8 = arith.constant 0 : index
    %c0_9 = arith.constant 0 : index
    %12 = vector.load %arg5[%c0_8, %c0_9] : memref<8x256xf32, #tpu.memory_space<vmem>>, vector<8x256xf32>
    tpu.vector_store %arg5[%c0_8, %c0_9], %11 {strides = array<i32>} : memref<8x256xf32, #tpu.memory_space<vmem>>, vector<8x256xf32>,
    return
  }
  func.func @transform_0(%arg0: i32) -> (i32, i32) {
    %c0_i32 = arith.constant 0 : i32
    %c0_i32_0 = arith.constant 0 : i32
    return %arg0, %c0_i32 : i32, i32
  }
  func.func @transform_1(%arg0: i32) -> (i32, i32) {
    %c0_i32 = arith.constant 0 : i32
    %c0_i32_0 = arith.constant 0 : i32
    %c0_i32_1 = arith.constant 0 : i32
    return %c0_i32, %c0_i32_0 : i32, i32
  }
  func.func @transform_2(%arg0: i32) -> (i32, i32) {
    %c0_i32 = arith.constant 0 : i32
    %c0_i32_0 = arith.constant 0 : i32
    %c0_i32_1 = arith.constant 0 : i32
    return %c0_i32, %c0_i32_0 : i32, i32
  }
  func.func @transform_3(%arg0: i32) -> (i32, i32) {
    %c0_i32 = arith.constant 0 : i32
    %c0_i32_0 = arith.constant 0 : i32
    %c0_i32_1 = arith.constant 0 : i32
    return %c0_i32, %c0_i32_0 : i32, i32
  }
  func.func @transform_4(%arg0: i32) -> (i32, i32) {
    %c0_i32 = arith.constant 0 : i32
    %c0_i32_0 = arith.constant 0 : i32
    return %arg0, %c0_i32 : i32, i32
  }
}

module attributes {stable_mosaic.version = 11 : i64} {
  func.func @_affine_relu_matmul_kernel(%arg0: i32, %arg1: memref<32x16xf32, #tpu.memory_space<vmem>>, %arg2: memref<1x16xf32, #tpu.memory_space<vmem>>, %arg3: memref<1x16xf32, #tpu.memory_space<vmem>>, %arg4: memref<16x128xbf16, #tpu.memory_space<vmem>>, %arg5: memref<32x128xf32, #tpu.memory_space<vmem>>) attributes {dimension_semantics = [#tpu.dimension_semantics<parallel>], iteration_bounds = array<i64: 1>, scalar_prefetch = 0 : i64, scratch_operands = 0 : i64, tpu.core_type = #tpu.core_type<tc>, window_params = [{transform_indices = @transform_0, window_bounds = array<i64: 32, 16>}, {pipeline_mode = #tpu.pipeline_mode<synchronous>, transform_indices = @transform_1, window_bounds = array<i64: 1, 16>}, {pipeline_mode = #tpu.pipeline_mode<synchronous>, transform_indices = @transform_2, window_bounds = array<i64: 1, 16>}, {pipeline_mode = #tpu.pipeline_mode<synchronous>, transform_indices = @transform_3, window_bounds = array<i64: 16, 128>}, {transform_indices = @transform_4, window_bounds = array<i64: 32, 128>}]} {
    %c0 = arith.constant 0 : index
    %c0_0 = arith.constant 0 : index
    %0 = vector.load %arg1[%c0, %c0_0] : memref<32x16xf32, #tpu.memory_space<vmem>>, vector<32x16xf32>
    %c0_1 = arith.constant 0 : index
    %c0_2 = arith.constant 0 : index
    %1 = vector.load %arg2[%c0_1, %c0_2] : memref<1x16xf32, #tpu.memory_space<vmem>>, vector<1x16xf32>
    %2 = vector.broadcast %1 : vector<1x16xf32> to vector<32x16xf32>
    %3 = arith.mulf %0, %2 : vector<32x16xf32>
    %c0_3 = arith.constant 0 : index
    %c0_4 = arith.constant 0 : index
    %4 = vector.load %arg3[%c0_3, %c0_4] : memref<1x16xf32, #tpu.memory_space<vmem>>, vector<1x16xf32>
    %5 = vector.broadcast %4 : vector<1x16xf32> to vector<32x16xf32>
    %6 = arith.addf %3, %5 : vector<32x16xf32>
    %cst = arith.constant 0.000000e+00 : f32
    %7 = vector.broadcast %cst : f32 to vector<32x16xf32>
    %8 = arith.maximumf %6, %7 : vector<32x16xf32>
    %9 = arith.truncf %8 : vector<32x16xf32> to vector<32x16xbf16>
    %c0_5 = arith.constant 0 : index
    %c0_6 = arith.constant 0 : index
    %10 = vector.load %arg4[%c0_5, %c0_6] : memref<16x128xbf16, #tpu.memory_space<vmem>>, vector<16x128xbf16>
    %cst_7 = arith.constant dense<0.000000e+00> : vector<32x128xf32>
    %11 = tpu.matmul %9, %10, %cst_7 {dimension_numbers = #tpu.dot_dimension_numbers<[1], [0], [0], [1], [0, 0, 1, 1], [], []>} : vector<32x16xbf16>, vector<16x128xbf16>, vector<32x128xf32> -> vector<32x128xf32>
    %c0_8 = arith.constant 0 : index
    %c0_9 = arith.constant 0 : index
    %12 = vector.load %arg5[%c0_8, %c0_9] : memref<32x128xf32, #tpu.memory_space<vmem>>, vector<32x128xf32>
    tpu.vector_store %arg5[%c0_8, %c0_9], %11 {strides = array<i32>} : memref<32x128xf32, #tpu.memory_space<vmem>>, vector<32x128xf32>,
    return
  }
  func.func @transform_0(%arg0: i32) -> (i32, i32) {
    %c0_i32 = arith.constant 0 : i32
    %c0_i32_0 = arith.constant 0 : i32
    return %arg0, %c0_i32 : i32, i32
  }
  func.func @transform_1(%arg0: i32) -> (i32, i32) {
    %c0_i32 = arith.constant 0 : i32
    %c0_i32_0 = arith.constant 0 : i32
    %c0_i32_1 = arith.constant 0 : i32
    return %c0_i32, %c0_i32_0 : i32, i32
  }
  func.func @transform_2(%arg0: i32) -> (i32, i32) {
    %c0_i32 = arith.constant 0 : i32
    %c0_i32_0 = arith.constant 0 : i32
    %c0_i32_1 = arith.constant 0 : i32
    return %c0_i32, %c0_i32_0 : i32, i32
  }
  func.func @transform_3(%arg0: i32) -> (i32, i32) {
    %c0_i32 = arith.constant 0 : i32
    %c0_i32_0 = arith.constant 0 : i32
    %c0_i32_1 = arith.constant 0 : i32
    return %c0_i32, %c0_i32_0 : i32, i32
  }
  func.func @transform_4(%arg0: i32) -> (i32, i32) {
    %c0_i32 = arith.constant 0 : i32
    %c0_i32_0 = arith.constant 0 : i32
    return %arg0, %c0_i32 : i32, i32
  }
}

module attributes {stable_mosaic.version = 11 : i64} {
  func.func @_stats_kernel(%arg0: i32, %arg1: memref<16x64xf32, #tpu.memory_space<vmem>>, %arg2: memref<1x64xf32, #tpu.memory_space<vmem>>, %arg3: memref<1x64xf32, #tpu.memory_space<vmem>>) attributes {dimension_semantics = [#tpu.dimension_semantics<arbitrary>], iteration_bounds = array<i64: 1>, scalar_prefetch = 0 : i64, scratch_operands = 0 : i64, tpu.core_type = #tpu.core_type<tc>, window_params = [{transform_indices = @transform_0, window_bounds = array<i64: 16, 64>}, {pipeline_mode = #tpu.pipeline_mode<synchronous>, transform_indices = @transform_1, window_bounds = array<i64: 1, 64>}, {pipeline_mode = #tpu.pipeline_mode<synchronous>, transform_indices = @transform_2, window_bounds = array<i64: 1, 64>}]} {
    %c0_i32 = arith.constant 0 : i32
    %0 = arith.cmpi eq, %arg0, %c0_i32 : i32
    %1 = arith.extui %0 : i1 to i32
    %c0_i32_0 = arith.constant 0 : i32
    %2 = arith.cmpi ne, %1, %c0_i32_0 : i32
    scf.if %2 {
      %cst_11 = arith.constant 0.000000e+00 : f32
      %15 = vector.broadcast %cst_11 : f32 to vector<1x64xf32>
      %c0_12 = arith.constant 0 : index
      %c0_13 = arith.constant 0 : index
      %16 = vector.load %arg2[%c0_12, %c0_13] : memref<1x64xf32, #tpu.memory_space<vmem>>, vector<1x64xf32>
      tpu.vector_store %arg2[%c0_12, %c0_13], %15 {strides = array<i32>} : memref<1x64xf32, #tpu.memory_space<vmem>>, vector<1x64xf32>,
      %cst_14 = arith.constant 0.000000e+00 : f32
      %17 = vector.broadcast %cst_14 : f32 to vector<1x64xf32>
      %c0_15 = arith.constant 0 : index
      %c0_16 = arith.constant 0 : index
      %18 = vector.load %arg3[%c0_15, %c0_16] : memref<1x64xf32, #tpu.memory_space<vmem>>, vector<1x64xf32>
      tpu.vector_store %arg3[%c0_15, %c0_16], %17 {strides = array<i32>} : memref<1x64xf32, #tpu.memory_space<vmem>>, vector<1x64xf32>,
    } else {
    }
    %c0 = arith.constant 0 : index
    %c0_1 = arith.constant 0 : index
    %3 = vector.load %arg1[%c0, %c0_1] : memref<16x64xf32, #tpu.memory_space<vmem>>, vector<16x64xf32>
    %c0_2 = arith.constant 0 : index
    %c0_3 = arith.constant 0 : index
    %4 = vector.load %arg2[%c0_2, %c0_3] : memref<1x64xf32, #tpu.memory_space<vmem>>, vector<1x64xf32>
    %cst = arith.constant dense<0.000000e+00> : vector<64xf32>
    %5 = vector.multi_reduction <add>, %3, %cst [0] : vector<16x64xf32> to vector<64xf32>
    %6 = vector.shape_cast %5 : vector<64xf32> to vector<1x64xf32>
    %7 = arith.addf %4, %6 : vector<1x64xf32>
    %c0_4 = arith.constant 0 : index
    %c0_5 = arith.constant 0 : index
    %8 = vector.load %arg2[%c0_4, %c0_5] : memref<1x64xf32, #tpu.memory_space<vmem>>, vector<1x64xf32>
    tpu.vector_store %arg2[%c0_4, %c0_5], %7 {strides = array<i32>} : memref<1x64xf32, #tpu.memory_space<vmem>>, vector<1x64xf32>,
    %c0_6 = arith.constant 0 : index
    %c0_7 = arith.constant 0 : index
    %9 = vector.load %arg3[%c0_6, %c0_7] : memref<1x64xf32, #tpu.memory_space<vmem>>, vector<1x64xf32>
    %10 = arith.mulf %3, %3 : vector<16x64xf32>
    %cst_8 = arith.constant dense<0.000000e+00> : vector<64xf32>
    %11 = vector.multi_reduction <add>, %10, %cst_8 [0] : vector<16x64xf32> to vector<64xf32>
    %12 = vector.shape_cast %11 : vector<64xf32> to vector<1x64xf32>
    %13 = arith.addf %9, %12 : vector<1x64xf32>
    %c0_9 = arith.constant 0 : index
    %c0_10 = arith.constant 0 : index
    %14 = vector.load %arg3[%c0_9, %c0_10] : memref<1x64xf32, #tpu.memory_space<vmem>>, vector<1x64xf32>
    tpu.vector_store %arg3[%c0_9, %c0_10], %13 {strides = array<i32>} : memref<1x64xf32, #tpu.memory_space<vmem>>, vector<1x64xf32>,
    return
  }
  func.func @transform_0(%arg0: i32) -> (i32, i32) {
    %c0_i32 = arith.constant 0 : i32
    %c0_i32_0 = arith.constant 0 : i32
    return %arg0, %c0_i32 : i32, i32
  }
  func.func @transform_1(%arg0: i32) -> (i32, i32) {
    %c0_i32 = arith.constant 0 : i32
    %c0_i32_0 = arith.constant 0 : i32
    %c0_i32_1 = arith.constant 0 : i32
    return %c0_i32, %c0_i32_0 : i32, i32
  }
  func.func @transform_2(%arg0: i32) -> (i32, i32) {
    %c0_i32 = arith.constant 0 : i32
    %c0_i32_0 = arith.constant 0 : i32
    %c0_i32_1 = arith.constant 0 : i32
    return %c0_i32, %c0_i32_0 : i32, i32
  }
}

module attributes {stable_mosaic.version = 11 : i64} {
  func.func @_affine_relu_matmul_kernel(%arg0: i32, %arg1: memref<128x8xf32, #tpu.memory_space<vmem>>, %arg2: memref<1x8xf32, #tpu.memory_space<vmem>>, %arg3: memref<1x8xf32, #tpu.memory_space<vmem>>, %arg4: memref<8x128xbf16, #tpu.memory_space<vmem>>, %arg5: memref<128x128xf32, #tpu.memory_space<vmem>>) attributes {dimension_semantics = [#tpu.dimension_semantics<parallel>], iteration_bounds = array<i64: 1>, scalar_prefetch = 0 : i64, scratch_operands = 0 : i64, tpu.core_type = #tpu.core_type<tc>, window_params = [{transform_indices = @transform_0, window_bounds = array<i64: 128, 8>}, {pipeline_mode = #tpu.pipeline_mode<synchronous>, transform_indices = @transform_1, window_bounds = array<i64: 1, 8>}, {pipeline_mode = #tpu.pipeline_mode<synchronous>, transform_indices = @transform_2, window_bounds = array<i64: 1, 8>}, {pipeline_mode = #tpu.pipeline_mode<synchronous>, transform_indices = @transform_3, window_bounds = array<i64: 8, 128>}, {transform_indices = @transform_4, window_bounds = array<i64: 128, 128>}]} {
    %c0 = arith.constant 0 : index
    %c0_0 = arith.constant 0 : index
    %0 = vector.load %arg1[%c0, %c0_0] : memref<128x8xf32, #tpu.memory_space<vmem>>, vector<128x8xf32>
    %c0_1 = arith.constant 0 : index
    %c0_2 = arith.constant 0 : index
    %1 = vector.load %arg2[%c0_1, %c0_2] : memref<1x8xf32, #tpu.memory_space<vmem>>, vector<1x8xf32>
    %2 = vector.broadcast %1 : vector<1x8xf32> to vector<128x8xf32>
    %3 = arith.mulf %0, %2 : vector<128x8xf32>
    %c0_3 = arith.constant 0 : index
    %c0_4 = arith.constant 0 : index
    %4 = vector.load %arg3[%c0_3, %c0_4] : memref<1x8xf32, #tpu.memory_space<vmem>>, vector<1x8xf32>
    %5 = vector.broadcast %4 : vector<1x8xf32> to vector<128x8xf32>
    %6 = arith.addf %3, %5 : vector<128x8xf32>
    %cst = arith.constant 0.000000e+00 : f32
    %7 = vector.broadcast %cst : f32 to vector<128x8xf32>
    %8 = arith.maximumf %6, %7 : vector<128x8xf32>
    %9 = arith.truncf %8 : vector<128x8xf32> to vector<128x8xbf16>
    %c0_5 = arith.constant 0 : index
    %c0_6 = arith.constant 0 : index
    %10 = vector.load %arg4[%c0_5, %c0_6] : memref<8x128xbf16, #tpu.memory_space<vmem>>, vector<8x128xbf16>
    %cst_7 = arith.constant dense<0.000000e+00> : vector<128x128xf32>
    %11 = tpu.matmul %9, %10, %cst_7 {dimension_numbers = #tpu.dot_dimension_numbers<[1], [0], [0], [1], [0, 0, 1, 1], [], []>} : vector<128x8xbf16>, vector<8x128xbf16>, vector<128x128xf32> -> vector<128x128xf32>
    %c0_8 = arith.constant 0 : index
    %c0_9 = arith.constant 0 : index
    %12 = vector.load %arg5[%c0_8, %c0_9] : memref<128x128xf32, #tpu.memory_space<vmem>>, vector<128x128xf32>
    tpu.vector_store %arg5[%c0_8, %c0_9], %11 {strides = array<i32>} : memref<128x128xf32, #tpu.memory_space<vmem>>, vector<128x128xf32>,
    return
  }
  func.func @transform_0(%arg0: i32) -> (i32, i32) {
    %c0_i32 = arith.constant 0 : i32
    %c0_i32_0 = arith.constant 0 : i32
    return %arg0, %c0_i32 : i32, i32
  }
  func.func @transform_1(%arg0: i32) -> (i32, i32) {
    %c0_i32 = arith.constant 0 : i32
    %c0_i32_0 = arith.constant 0 : i32
    %c0_i32_1 = arith.constant 0 : i32
    return %c0_i32, %c0_i32_0 : i32, i32
  }
  func.func @transform_2(%arg0: i32) -> (i32, i32) {
    %c0_i32 = arith.constant 0 : i32
    %c0_i32_0 = arith.constant 0 : i32
    %c0_i32_1 = arith.constant 0 : i32
    return %c0_i32, %c0_i32_0 : i32, i32
  }
  func.func @transform_3(%arg0: i32) -> (i32, i32) {
    %c0_i32 = arith.constant 0 : i32
    %c0_i32_0 = arith.constant 0 : i32
    %c0_i32_1 = arith.constant 0 : i32
    return %c0_i32, %c0_i32_0 : i32, i32
  }
  func.func @transform_4(%arg0: i32) -> (i32, i32) {
    %c0_i32 = arith.constant 0 : i32
    %c0_i32_0 = arith.constant 0 : i32
    return %arg0, %c0_i32 : i32, i32
  }
}

module attributes {stable_mosaic.version = 11 : i64} {
  func.func @_stats_kernel(%arg0: i32, %arg1: memref<32x64xf32, #tpu.memory_space<vmem>>, %arg2: memref<1x64xf32, #tpu.memory_space<vmem>>, %arg3: memref<1x64xf32, #tpu.memory_space<vmem>>) attributes {dimension_semantics = [#tpu.dimension_semantics<arbitrary>], iteration_bounds = array<i64: 1>, scalar_prefetch = 0 : i64, scratch_operands = 0 : i64, tpu.core_type = #tpu.core_type<tc>, window_params = [{transform_indices = @transform_0, window_bounds = array<i64: 32, 64>}, {pipeline_mode = #tpu.pipeline_mode<synchronous>, transform_indices = @transform_1, window_bounds = array<i64: 1, 64>}, {pipeline_mode = #tpu.pipeline_mode<synchronous>, transform_indices = @transform_2, window_bounds = array<i64: 1, 64>}]} {
    %c0_i32 = arith.constant 0 : i32
    %0 = arith.cmpi eq, %arg0, %c0_i32 : i32
    %1 = arith.extui %0 : i1 to i32
    %c0_i32_0 = arith.constant 0 : i32
    %2 = arith.cmpi ne, %1, %c0_i32_0 : i32
    scf.if %2 {
      %cst_11 = arith.constant 0.000000e+00 : f32
      %15 = vector.broadcast %cst_11 : f32 to vector<1x64xf32>
      %c0_12 = arith.constant 0 : index
      %c0_13 = arith.constant 0 : index
      %16 = vector.load %arg2[%c0_12, %c0_13] : memref<1x64xf32, #tpu.memory_space<vmem>>, vector<1x64xf32>
      tpu.vector_store %arg2[%c0_12, %c0_13], %15 {strides = array<i32>} : memref<1x64xf32, #tpu.memory_space<vmem>>, vector<1x64xf32>,
      %cst_14 = arith.constant 0.000000e+00 : f32
      %17 = vector.broadcast %cst_14 : f32 to vector<1x64xf32>
      %c0_15 = arith.constant 0 : index
      %c0_16 = arith.constant 0 : index
      %18 = vector.load %arg3[%c0_15, %c0_16] : memref<1x64xf32, #tpu.memory_space<vmem>>, vector<1x64xf32>
      tpu.vector_store %arg3[%c0_15, %c0_16], %17 {strides = array<i32>} : memref<1x64xf32, #tpu.memory_space<vmem>>, vector<1x64xf32>,
    } else {
    }
    %c0 = arith.constant 0 : index
    %c0_1 = arith.constant 0 : index
    %3 = vector.load %arg1[%c0, %c0_1] : memref<32x64xf32, #tpu.memory_space<vmem>>, vector<32x64xf32>
    %c0_2 = arith.constant 0 : index
    %c0_3 = arith.constant 0 : index
    %4 = vector.load %arg2[%c0_2, %c0_3] : memref<1x64xf32, #tpu.memory_space<vmem>>, vector<1x64xf32>
    %cst = arith.constant dense<0.000000e+00> : vector<64xf32>
    %5 = vector.multi_reduction <add>, %3, %cst [0] : vector<32x64xf32> to vector<64xf32>
    %6 = vector.shape_cast %5 : vector<64xf32> to vector<1x64xf32>
    %7 = arith.addf %4, %6 : vector<1x64xf32>
    %c0_4 = arith.constant 0 : index
    %c0_5 = arith.constant 0 : index
    %8 = vector.load %arg2[%c0_4, %c0_5] : memref<1x64xf32, #tpu.memory_space<vmem>>, vector<1x64xf32>
    tpu.vector_store %arg2[%c0_4, %c0_5], %7 {strides = array<i32>} : memref<1x64xf32, #tpu.memory_space<vmem>>, vector<1x64xf32>,
    %c0_6 = arith.constant 0 : index
    %c0_7 = arith.constant 0 : index
    %9 = vector.load %arg3[%c0_6, %c0_7] : memref<1x64xf32, #tpu.memory_space<vmem>>, vector<1x64xf32>
    %10 = arith.mulf %3, %3 : vector<32x64xf32>
    %cst_8 = arith.constant dense<0.000000e+00> : vector<64xf32>
    %11 = vector.multi_reduction <add>, %10, %cst_8 [0] : vector<32x64xf32> to vector<64xf32>
    %12 = vector.shape_cast %11 : vector<64xf32> to vector<1x64xf32>
    %13 = arith.addf %9, %12 : vector<1x64xf32>
    %c0_9 = arith.constant 0 : index
    %c0_10 = arith.constant 0 : index
    %14 = vector.load %arg3[%c0_9, %c0_10] : memref<1x64xf32, #tpu.memory_space<vmem>>, vector<1x64xf32>
    tpu.vector_store %arg3[%c0_9, %c0_10], %13 {strides = array<i32>} : memref<1x64xf32, #tpu.memory_space<vmem>>, vector<1x64xf32>,
    return
  }
  func.func @transform_0(%arg0: i32) -> (i32, i32) {
    %c0_i32 = arith.constant 0 : i32
    %c0_i32_0 = arith.constant 0 : i32
    return %arg0, %c0_i32 : i32, i32
  }
  func.func @transform_1(%arg0: i32) -> (i32, i32) {
    %c0_i32 = arith.constant 0 : i32
    %c0_i32_0 = arith.constant 0 : i32
    %c0_i32_1 = arith.constant 0 : i32
    return %c0_i32, %c0_i32_0 : i32, i32
  }
  func.func @transform_2(%arg0: i32) -> (i32, i32) {
    %c0_i32 = arith.constant 0 : i32
    %c0_i32_0 = arith.constant 0 : i32
    %c0_i32_1 = arith.constant 0 : i32
    return %c0_i32, %c0_i32_0 : i32, i32
  }
}

module attributes {stable_mosaic.version = 11 : i64} {
  func.func @_affine_relu_matmul_kernel(%arg0: i32, %arg1: memref<256x4xf32, #tpu.memory_space<vmem>>, %arg2: memref<1x4xf32, #tpu.memory_space<vmem>>, %arg3: memref<1x4xf32, #tpu.memory_space<vmem>>, %arg4: memref<4x128xbf16, #tpu.memory_space<vmem>>, %arg5: memref<256x128xf32, #tpu.memory_space<vmem>>) attributes {dimension_semantics = [#tpu.dimension_semantics<parallel>], iteration_bounds = array<i64: 2>, scalar_prefetch = 0 : i64, scratch_operands = 0 : i64, tpu.core_type = #tpu.core_type<tc>, window_params = [{transform_indices = @transform_0, window_bounds = array<i64: 256, 4>}, {pipeline_mode = #tpu.pipeline_mode<synchronous>, transform_indices = @transform_1, window_bounds = array<i64: 1, 4>}, {pipeline_mode = #tpu.pipeline_mode<synchronous>, transform_indices = @transform_2, window_bounds = array<i64: 1, 4>}, {pipeline_mode = #tpu.pipeline_mode<synchronous>, transform_indices = @transform_3, window_bounds = array<i64: 4, 128>}, {transform_indices = @transform_4, window_bounds = array<i64: 256, 128>}]} {
    %c0 = arith.constant 0 : index
    %c0_0 = arith.constant 0 : index
    %0 = vector.load %arg1[%c0, %c0_0] : memref<256x4xf32, #tpu.memory_space<vmem>>, vector<256x4xf32>
    %c0_1 = arith.constant 0 : index
    %c0_2 = arith.constant 0 : index
    %1 = vector.load %arg2[%c0_1, %c0_2] : memref<1x4xf32, #tpu.memory_space<vmem>>, vector<1x4xf32>
    %2 = vector.broadcast %1 : vector<1x4xf32> to vector<256x4xf32>
    %3 = arith.mulf %0, %2 : vector<256x4xf32>
    %c0_3 = arith.constant 0 : index
    %c0_4 = arith.constant 0 : index
    %4 = vector.load %arg3[%c0_3, %c0_4] : memref<1x4xf32, #tpu.memory_space<vmem>>, vector<1x4xf32>
    %5 = vector.broadcast %4 : vector<1x4xf32> to vector<256x4xf32>
    %6 = arith.addf %3, %5 : vector<256x4xf32>
    %cst = arith.constant 0.000000e+00 : f32
    %7 = vector.broadcast %cst : f32 to vector<256x4xf32>
    %8 = arith.maximumf %6, %7 : vector<256x4xf32>
    %9 = arith.truncf %8 : vector<256x4xf32> to vector<256x4xbf16>
    %c0_5 = arith.constant 0 : index
    %c0_6 = arith.constant 0 : index
    %10 = vector.load %arg4[%c0_5, %c0_6] : memref<4x128xbf16, #tpu.memory_space<vmem>>, vector<4x128xbf16>
    %cst_7 = arith.constant dense<0.000000e+00> : vector<256x128xf32>
    %11 = tpu.matmul %9, %10, %cst_7 {dimension_numbers = #tpu.dot_dimension_numbers<[1], [0], [0], [1], [0, 0, 1, 1], [], []>} : vector<256x4xbf16>, vector<4x128xbf16>, vector<256x128xf32> -> vector<256x128xf32>
    %c0_8 = arith.constant 0 : index
    %c0_9 = arith.constant 0 : index
    %12 = vector.load %arg5[%c0_8, %c0_9] : memref<256x128xf32, #tpu.memory_space<vmem>>, vector<256x128xf32>
    tpu.vector_store %arg5[%c0_8, %c0_9], %11 {strides = array<i32>} : memref<256x128xf32, #tpu.memory_space<vmem>>, vector<256x128xf32>,
    return
  }
  func.func @transform_0(%arg0: i32) -> (i32, i32) {
    %c0_i32 = arith.constant 0 : i32
    %c0_i32_0 = arith.constant 0 : i32
    return %arg0, %c0_i32 : i32, i32
  }
  func.func @transform_1(%arg0: i32) -> (i32, i32) {
    %c0_i32 = arith.constant 0 : i32
    %c0_i32_0 = arith.constant 0 : i32
    %c0_i32_1 = arith.constant 0 : i32
    return %c0_i32, %c0_i32_0 : i32, i32
  }
  func.func @transform_2(%arg0: i32) -> (i32, i32) {
    %c0_i32 = arith.constant 0 : i32
    %c0_i32_0 = arith.constant 0 : i32
    %c0_i32_1 = arith.constant 0 : i32
    return %c0_i32, %c0_i32_0 : i32, i32
  }
  func.func @transform_3(%arg0: i32) -> (i32, i32) {
    %c0_i32 = arith.constant 0 : i32
    %c0_i32_0 = arith.constant 0 : i32
    %c0_i32_1 = arith.constant 0 : i32
    return %c0_i32, %c0_i32_0 : i32, i32
  }
  func.func @transform_4(%arg0: i32) -> (i32, i32) {
    %c0_i32 = arith.constant 0 : i32
    %c0_i32_0 = arith.constant 0 : i32
    return %arg0, %c0_i32 : i32, i32
  }
}

module attributes {stable_mosaic.version = 11 : i64} {
  func.func @_bias_tanh_kernel(%arg0: i32, %arg1: memref<64x96xf32, #tpu.memory_space<vmem>>, %arg2: memref<1x96xf32, #tpu.memory_space<vmem>>, %arg3: memref<64x96xf32, #tpu.memory_space<vmem>>) attributes {dimension_semantics = [#tpu.dimension_semantics<parallel>], iteration_bounds = array<i64: 1>, scalar_prefetch = 0 : i64, scratch_operands = 0 : i64, tpu.core_type = #tpu.core_type<tc>, window_params = [{transform_indices = @transform_0, window_bounds = array<i64: 64, 96>}, {pipeline_mode = #tpu.pipeline_mode<synchronous>, transform_indices = @transform_1, window_bounds = array<i64: 1, 96>}, {transform_indices = @transform_2, window_bounds = array<i64: 64, 96>}]} {
    %c0 = arith.constant 0 : index
    %c0_0 = arith.constant 0 : index
    %0 = vector.load %arg1[%c0, %c0_0] : memref<64x96xf32, #tpu.memory_space<vmem>>, vector<64x96xf32>
    %c0_1 = arith.constant 0 : index
    %c0_2 = arith.constant 0 : index
    %1 = vector.load %arg2[%c0_1, %c0_2] : memref<1x96xf32, #tpu.memory_space<vmem>>, vector<1x96xf32>
    %2 = vector.broadcast %1 : vector<1x96xf32> to vector<64x96xf32>
    %3 = arith.addf %0, %2 : vector<64x96xf32>
    %4 = math.tanh %3 : vector<64x96xf32>
    %c0_3 = arith.constant 0 : index
    %c0_4 = arith.constant 0 : index
    %5 = vector.load %arg3[%c0_3, %c0_4] : memref<64x96xf32, #tpu.memory_space<vmem>>, vector<64x96xf32>
    tpu.vector_store %arg3[%c0_3, %c0_4], %4 {strides = array<i32>} : memref<64x96xf32, #tpu.memory_space<vmem>>, vector<64x96xf32>,
    return
  }
  func.func @transform_0(%arg0: i32) -> (i32, i32) {
    %c0_i32 = arith.constant 0 : i32
    %c0_i32_0 = arith.constant 0 : i32
    return %arg0, %c0_i32 : i32, i32
  }
  func.func @transform_1(%arg0: i32) -> (i32, i32) {
    %c0_i32 = arith.constant 0 : i32
    %c0_i32_0 = arith.constant 0 : i32
    %c0_i32_1 = arith.constant 0 : i32
    return %c0_i32, %c0_i32_0 : i32, i32
  }
  func.func @transform_2(%arg0: i32) -> (i32, i32) {
    %c0_i32 = arith.constant 0 : i32
    %c0_i32_0 = arith.constant 0 : i32
    return %arg0, %c0_i32 : i32, i32
  }
}

</mosaic_0001>

<llo_original>
// kernel: decoder_forward.10
$region0: #{decoder_forward.10}
  #allocation0 [shape = 'u32[]', space=smem, size = 0x4, offset = 0x4, fixed_abs, tag = 'smem constant byte address 0x4 - core index']
  #allocation1 [shape = 'u32[72,128]{1,0:T(1,128)}', space=vmem, size = 0x9000, scoped, tag = 'internal scratch']
  %s0 = inlined_call_operand.vmem [shape: f32[8,16], index: 0, kind: input, shape index: {}]
  %s1 = inlined_call_operand.vmem [shape: bf16[16,128], index: 1, kind: input, shape index: {}]
  %s2 = inlined_call_operand.vmem [shape: f32[8,128], index: 2, kind: output, shape index: {}]
  %s3 = sld [smem:[#allocation0]]
  $region18: #{decoder_forward.10} parent=0
    _
  %s5 = ssub.s32 1, %s3
  %s6 = scalar_select 0, %s5, %s3
  // Predicated region
  $region2: #{decoder_forward.10} parent=0 // pred_check
    _
  $region3: #{decoder_forward.10} parent=0 // pred_check_branch
    %8 = sbr.rel (0) target = $region5
  $region4: #{decoder_forward.10} parent=0 // pred_region
    _
  $region5: #{decoder_forward.10} parent=0 // pred_fallthru
    _
  // Predicated region
  $region6: #{decoder_forward.10} parent=0 // pred_check
    _
  $region7: #{decoder_forward.10} parent=0 // pred_check_branch
    %10 = sbr.rel (0) target = $region9
  $region8: #{decoder_forward.10} parent=0 // pred_region
    _
  $region9: #{decoder_forward.10} parent=0 // pred_fallthru
    _
  %v12 = vld [vmem:[%s0] sm:$0xff]
  %v13 = vpack.c.bf16 %v12, %v12
  %v14 = vld [vmem:[%s1] sm:$0xf]
  %v15 = vld [vmem:[%s1 + $0x4] sm:$0xf]
  %v18 = vunpack.c.l.b16 %v14
  %v19 = vunpack.c.l.b16 %v15
  %v20 = vpack.c.b16 %v19, %v18
  %vm22 = vcmask 130048
  %v24 = vsel %vm22, %v13, 0
  %26 = vmatpush.bf16.msra.mxu0 0
  %27 = vmatpush.bf16.msra.mxu0 0
  %28 = vmatpush.bf16.msra.mxu0 0
  %29 = vmatpush.bf16.msra.mxu0 0
  %30 = vmatpush.bf16.msra.mxu0 0
  %31 = vmatpush.bf16.msra.mxu0 0
  %32 = vmatpush.bf16.msra.mxu0 0
  %33 = vmatpush.bf16.msra.mxu0 %v20
  %34 = vmatmul.bf16.gmra.mxu0 %v24
  %v35 = vpop.f32.mrf.mxu0
  %v36 = vadd.f32 0.0, %v35
  %v37 = vpop.f32.mrf.mxu0
  %38 = vdwg.mxu0
  %39 = vst [vmem:[%s2] sm:$0xff] %v36
  // Predicated region
  $region10: #{decoder_forward.10} parent=0 // pred_check
    _
  $region11: #{decoder_forward.10} parent=0 // pred_check_branch
    %41 = sbr.rel (0) target = $region13
  $region12: #{decoder_forward.10} parent=0 // pred_region
    _
  $region13: #{decoder_forward.10} parent=0 // pred_fallthru
    _
  // Predicated region
  $region14: #{decoder_forward.10} parent=0 // pred_check
    _
  $region15: #{decoder_forward.10} parent=0 // pred_check_branch
    %43 = sbr.rel (0) target = $region17
  $region16: #{decoder_forward.10} parent=0 // pred_region
    _
  $region17: #{decoder_forward.10} parent=0 // pred_fallthru
    _

// kernel: decoder_forward.11
$region0: #{decoder_forward.11}
  #allocation0 [shape = 'u32[]', space=smem, size = 0x4, offset = 0x4, fixed_abs, tag = 'smem constant byte address 0x4 - core index']
  #allocation1 [shape = 'u32[72,128]{1,0:T(1,128)}', space=vmem, size = 0x9000, scoped, tag = 'internal scratch']
  %s0 = inlined_call_operand.vmem [shape: f32[8,64], index: 0, kind: input, shape index: {}]
  %s1 = inlined_call_operand.vmem [shape: f32[1,64], index: 1, kind: output, shape index: {0}]
  %s2 = inlined_call_operand.vmem [shape: f32[1,64], index: 2, kind: output, shape index: {1}]
  %3 = xla_tuple %s1, %s2
  %s4 = sld [smem:[#allocation0]]
  $region26: #{decoder_forward.11} parent=0
    _
  %s6 = ssub.s32 1, %s4
  %s7 = scalar_select 0, %s6, %s4
  // Predicated region
  $region2: #{decoder_forward.11} parent=0 // pred_check
    _
  $region3: #{decoder_forward.11} parent=0 // pred_check_branch
    %9 = sbr.rel (0) target = $region5
  $region4: #{decoder_forward.11} parent=0 // pred_region
    _
  $region5: #{decoder_forward.11} parent=0 // pred_fallthru
    _
  %p10 = scmp.eq.s32.totalorder 0, 0
  // Predicated region
  $region6: #{decoder_forward.11} parent=0 // pred_check
    %p11 = pneg %p10
  $region7: #{decoder_forward.11} parent=0 // pred_check_branch
    %13 = sbr.rel (%p11) target = $region9
  $region8: #{decoder_forward.11} parent=0 // pred_region
    %vm14 = vcmask 516096
    %15 = vst.msk [vmem:[%s1] sm:$0x1] %vm14, 0.0
    %16 = vst.msk [vmem:[%s2] sm:$0x1] %vm14, 0.0
  $region9: #{decoder_forward.11} parent=0 // pred_fallthru
    _
  %v17 = vld [vmem:[%s0] sm:$0xff]
  %v18 = vld [vmem:[%s1] sm:$0x1]
  %vm19 = vcmask 523264
  %v20 = vsel %vm19, %v17, 0.0
  %v21 = vrot.slane %v20, 4
  %v22 = vadd.f32 %v20, %v21
  %v23 = vrot.slane %v22, 2
  %v24 = vadd.f32 %v22, %v23
  %v25 = vrot.slane %v24, 1
  %v26 = vadd.f32 %v24, %v25
  %v27 = vadd.f32 %v18, %v26
  %vm28 = vcmask 516096
  %29 = vst.msk [vmem:[%s1] sm:$0x1] %vm28, %v27
  %v30 = vld [vmem:[%s2] sm:$0x1]
  %v31 = vmul.f32 %v17, %v17
  %v32 = vsel %vm19, %v31, 0.0
  %v33 = vrot.slane %v32, 4
  %v34 = vadd.f32 %v32, %v33
  %v35 = vrot.slane %v34, 2
  %v36 = vadd.f32 %v34, %v35
  %v37 = vrot.slane %v36, 1
  %v38 = vadd.f32 %v36, %v37
  %v39 = vadd.f32 %v30, %v38
  %40 = vst.msk [vmem:[%s2] sm:$0x1] %vm28, %v39
  // Predicated region
  $region10: #{decoder_forward.11} parent=0 // pred_check
    _
  $region11: #{decoder_forward.11} parent=0 // pred_check_branch
    %42 = sbr.rel (0) target = $region13
  $region12: #{decoder_forward.11} parent=0 // pred_region
    _
  $region13: #{decoder_forward.11} parent=0 // pred_fallthru
    _
  // Predicated region
  $region14: #{decoder_forward.11} parent=0 // pred_check
    _
  $region15: #{decoder_forward.11} parent=0 // pred_check_branch
    %44 = sbr.rel (0) target = $region17
  $region16: #{decoder_forward.11} parent=0 // pred_region
    _
  $region17: #{decoder_forward.11} parent=0 // pred_fallthru
    _
  // Predicated region
  $region18: #{decoder_forward.11} parent=0 // pred_check
    _
  $region19: #{decoder_forward.11} parent=0 // pred_check_branch
    %46 = sbr.rel (0) target = $region21
  $region20: #{decoder_forward.11} parent=0 // pred_region
    _
  $region21: #{decoder_forward.11} parent=0 // pred_fallthru
    _
  // Predicated region
  $region22: #{decoder_forward.11} parent=0 // pred_check
    _
  $region23: #{decoder_forward.11} parent=0 // pred_check_branch
    %48 = sbr.rel (0) target = $region25
  $region24: #{decoder_forward.11} parent=0 // pred_region
    _
  $region25: #{decoder_forward.11} parent=0 // pred_fallthru
    _

// kernel: decoder_forward.12
$region0: #{decoder_forward.12}
  #allocation0 [shape = 'u32[]', space=smem, size = 0x4, offset = 0x4, fixed_abs, tag = 'smem constant byte address 0x4 - core index']
  #allocation1 [shape = 'u32[72,128]{1,0:T(1,128)}', space=vmem, size = 0x9000, scoped, tag = 'internal scratch']
  %s0 = inlined_call_operand.vmem [shape: f32[8,32], index: 0, kind: input, shape index: {}]
  %s1 = inlined_call_operand.vmem [shape: f32[1,32], index: 1, kind: input, shape index: {}]
  %s2 = inlined_call_operand.vmem [shape: f32[1,32], index: 2, kind: input, shape index: {}]
  %s3 = inlined_call_operand.vmem [shape: bf16[32,256], index: 3, kind: input, shape index: {}]
  %s4 = inlined_call_operand.vmem [shape: f32[8,256], index: 4, kind: output, shape index: {}]
  %s5 = sld [smem:[#allocation0]]
  $region26: #{decoder_forward.12} parent=0
    _
  %s7 = ssub.s32 1, %s5
  %s8 = scalar_select 0, %s7, %s5
  // Predicated region
  $region2: #{decoder_forward.12} parent=0 // pred_check
    _
  $region3: #{decoder_forward.12} parent=0 // pred_check_branch
    %10 = sbr.rel (0) target = $region5
  $region4: #{decoder_forward.12} parent=0 // pred_region
    _
  $region5: #{decoder_forward.12} parent=0 // pred_fallthru
    _
  // Predicated region
  $region6: #{decoder_forward.12} parent=0 // pred_check
    _
  $region7: #{decoder_forward.12} parent=0 // pred_check_branch
    %12 = sbr.rel (0) target = $region9
  $region8: #{decoder_forward.12} parent=0 // pred_region
    _
  $region9: #{decoder_forward.12} parent=0 // pred_fallthru
    _
  // Predicated region
  $region10: #{decoder_forward.12} parent=0 // pred_check
    _
  $region11: #{decoder_forward.12} parent=0 // pred_check_branch
    %14 = sbr.rel (0) target = $region13
  $region12: #{decoder_forward.12} parent=0 // pred_region
    _
  $region13: #{decoder_forward.12} parent=0 // pred_fallthru
    _
  // Predicated region
  $region14: #{decoder_forward.12} parent=0 // pred_check
    _
  $region15: #{decoder_forward.12} parent=0 // pred_check_branch
    %16 = sbr.rel (0) target = $region17
  $region16: #{decoder_forward.12} parent=0 // pred_region
    _
  $region17: #{decoder_forward.12} parent=0 // pred_fallthru
    _
  %v18 = vld [vmem:[%s0] sm:$0xff]
  %v19 = vld [vmem:[%s1] sm:$0x1]
  %v21 = vperm.slane %v19, 0
  %v23 = vmul.f32 %v18, %v21
  %v24 = vld [vmem:[%s2] sm:$0x1]
  %v26 = vperm.slane %v24, 0
  %v28 = vadd.f32 %v23, %v26
  %v29 = vmax.f32 %v28, 0.0
  %v30 = vpack.c.bf16 %v29, %v29
  %v31 = vld [vmem:[%s3] sm:$0xff]
  %v32 = vld [vmem:[%s3 + $0x8] sm:$0xff]
  %v33 = vld [vmem:[%s3 + $0x10] sm:$0xff]
  %v34 = vld [vmem:[%s3 + $0x18] sm:$0xff]
  %v39 = vunpack.c.l.b16 %v31
  %v40 = vunpack.c.h.b16 %v31
  %v41 = vunpack.c.l.b16 %v32
  %v42 = vunpack.c.h.b16 %v32
  %v43 = vunpack.c.l.b16 %v33
  %v44 = vunpack.c.h.b16 %v33
  %v45 = vunpack.c.l.b16 %v34
  %v46 = vunpack.c.h.b16 %v34
  %v47 = vpack.c.b16 %v41, %v39
  %v48 = vpack.c.b16 %v42, %v40
  %v49 = vpack.c.b16 %v45, %v43
  %v50 = vpack.c.b16 %v46, %v44
  %vm55 = vcmask 261120
  %v57 = vsel %vm55, %v30, 0
  %59 = vmatpush.bf16.msra.mxu0 0
  %60 = vmatpush.bf16.msra.mxu0 0
  %61 = vmatpush.bf16.msra.mxu0 0
  %62 = vmatpush.bf16.msra.mxu0 0
  %63 = vmatpush.bf16.msra.mxu0 0
  %64 = vmatpush.bf16.msra.mxu0 0
  %65 = vmatpush.bf16.msra.mxu0 %v49
  %66 = vmatpush.bf16.msra.mxu0 %v47
  %67 = vmatmul.bf16.gmra.mxu0 %v57
  %v68 = vpop.f32.mrf.mxu0
  %v69 = vadd.f32 0.0, %v68
  %v70 = vpop.f32.mrf.mxu0
  %71 = vdwg.mxu0
  %72 = vmatpush.bf16.msra.mxu0 0
  %73 = vmatpush.bf16.msra.mxu0 0
  %74 = vmatpush.bf16.msra.mxu0 0
  %75 = vmatpush.bf16.msra.mxu0 0
  %76 = vmatpush.bf16.msra.mxu0 0
  %77 = vmatpush.bf16.msra.mxu0 0
  %78 = vmatpush.bf16.msra.mxu0 %v50
  %79 = vmatpush.bf16.msra.mxu0 %v48
  %80 = vmatmul.bf16.gmra.mxu0 %v57
  %v81 = vpop.f32.mrf.mxu0
  %v82 = vadd.f32 0.0, %v81
  %v83 = vpop.f32.mrf.mxu0
  %84 = vdwg.mxu0
  %85 = vst [vmem:[%s4] sm:$0xff] %v69
  %86 = vst [vmem:[%s4 + $0x8] sm:$0xff] %v82
  // Predicated region
  $region18: #{decoder_forward.12} parent=0 // pred_check
    _
  $region19: #{decoder_forward.12} parent=0 // pred_check_branch
    %88 = sbr.rel (0) target = $region21
  $region20: #{decoder_forward.12} parent=0 // pred_region
    _
  $region21: #{decoder_forward.12} parent=0 // pred_fallthru
    _
  // Predicated region
  $region22: #{decoder_forward.12} parent=0 // pred_check
    _
  $region23: #{decoder_forward.12} parent=0 // pred_check_branch
    %90 = sbr.rel (0) target = $region25
  $region24: #{decoder_forward.12} parent=0 // pred_region
    _
  $region25: #{decoder_forward.12} parent=0 // pred_fallthru
    _

// kernel: decoder_forward.14
$region0: #{decoder_forward.14}
  #allocation0 [shape = 'u32[]', space=smem, size = 0x4, offset = 0x4, fixed_abs, tag = 'smem constant byte address 0x4 - core index']
  #allocation1 [shape = 'u32[72,128]{1,0:T(1,128)}', space=vmem, size = 0x9000, scoped, tag = 'internal scratch']
  %s0 = inlined_call_operand.vmem [shape: f32[32,16], index: 0, kind: input, shape index: {}]
  %s1 = inlined_call_operand.vmem [shape: f32[1,16], index: 1, kind: input, shape index: {}]
  %s2 = inlined_call_operand.vmem [shape: f32[1,16], index: 2, kind: input, shape index: {}]
  %s3 = inlined_call_operand.vmem [shape: bf16[16,128], index: 3, kind: input, shape index: {}]
  %s4 = inlined_call_operand.vmem [shape: f32[32,128], index: 4, kind: output, shape index: {}]
  %s5 = sld [smem:[#allocation0]]
  $region26: #{decoder_forward.14} parent=0
    _
  %s7 = ssub.s32 1, %s5
  %s8 = scalar_select 0, %s7, %s5
  // Predicated region
  $region2: #{decoder_forward.14} parent=0 // pred_check
    _
  $region3: #{decoder_forward.14} parent=0 // pred_check_branch
    %10 = sbr.rel (0) target = $region5
  $region4: #{decoder_forward.14} parent=0 // pred_region
    _
  $region5: #{decoder_forward.14} parent=0 // pred_fallthru
    _
  // Predicated region
  $region6: #{decoder_forward.14} parent=0 // pred_check
    _
  $region7: #{decoder_forward.14} parent=0 // pred_check_branch
    %12 = sbr.rel (0) target = $region9
  $region8: #{decoder_forward.14} parent=0 // pred_region
    _
  $region9: #{decoder_forward.14} parent=0 // pred_fallthru
    _
  // Predicated region
  $region10: #{decoder_forward.14} parent=0 // pred_check
    _
  $region11: #{decoder_forward.14} parent=0 // pred_check_branch
    %14 = sbr.rel (0) target = $region13
  $region12: #{decoder_forward.14} parent=0 // pred_region
    _
  $region13: #{decoder_forward.14} parent=0 // pred_fallthru
    _
  // Predicated region
  $region14: #{decoder_forward.14} parent=0 // pred_check
    _
  $region15: #{decoder_forward.14} parent=0 // pred_check_branch
    %16 = sbr.rel (0) target = $region17
  $region16: #{decoder_forward.14} parent=0 // pred_region
    _
  $region17: #{decoder_forward.14} parent=0 // pred_fallthru
    _
  %v18 = vld [vmem:[%s0] sm:$0xff]
  %v19 = vld [vmem:[%s0 + $0x8] sm:$0xff]
  %v20 = vld [vmem:[%s0 + $0x10] sm:$0xff]
  %v21 = vld [vmem:[%s0 + $0x18] sm:$0xff]
  %v22 = vld [vmem:[%s1] sm:$0x1]
  %v24 = vperm.slane %v22, 0
  %v26 = vmul.f32 %v18, %v24
  %v27 = vmul.f32 %v19, %v24
  %v28 = vmul.f32 %v20, %v24
  %v29 = vmul.f32 %v21, %v24
  %v30 = vld [vmem:[%s2] sm:$0x1]
  %v32 = vperm.slane %v30, 0
  %v34 = vadd.f32 %v26, %v32
  %v35 = vadd.f32 %v27, %v32
  %v36 = vadd.f32 %v28, %v32
  %v37 = vadd.f32 %v29, %v32
  %v38 = vmax.f32 %v34, 0.0
  %v39 = vmax.f32 %v35, 0.0
  %v40 = vmax.f32 %v36, 0.0
  %v41 = vmax.f32 %v37, 0.0
  %v42 = vpack.c.bf16 %v39, %v38
  %v43 = vpack.c.bf16 %v41, %v40
  %v44 = vld [vmem:[%s3] sm:$0xf]
  %v45 = vld [vmem:[%s3 + $0x4] sm:$0xf]
  %v48 = vunpack.c.l.b16 %v44
  %v49 = vunpack.c.l.b16 %v45
  %v50 = vpack.c.b16 %v49, %v48
  %vm52 = vcmask 130048
  %v54 = vsel %vm52, %v42, 0
  %v57 = vsel %vm52, %v43, 0
  %59 = vmatpush.bf16.msra.mxu0 0
  %60 = vmatpush.bf16.msra.mxu0 0
  %61 = vmatpush.bf16.msra.mxu0 0
  %62 = vmatpush.bf16.msra.mxu0 0
  %63 = vmatpush.bf16.msra.mxu0 0
  %64 = vmatpush.bf16.msra.mxu0 0
  %65 = vmatpush.bf16.msra.mxu0 0
  %66 = vmatpush.bf16.msra.mxu0 %v50
  %67 = vmatmul.bf16.gmra.mxu0 %v54
  %v68 = vpop.f32.mrf.mxu0
  %v69 = vadd.f32 0.0, %v68
  %v70 = vpop.f32.mrf.mxu0
  %v71 = vadd.f32 0.0, %v70
  %72 = vmatmul.bf16.gmra.mxu0 %v57
  %v73 = vpop.f32.mrf.mxu0
  %v74 = vadd.f32 0.0, %v73
  %v75 = vpop.f32.mrf.mxu0
  %v76 = vadd.f32 0.0, %v75
  %77 = vdwg.mxu0
  %78 = vst [vmem:[%s4] sm:$0xff] %v69
  %79 = vst [vmem:[%s4 + $0x8] sm:$0xff] %v71
  %80 = vst [vmem:[%s4 + $0x10] sm:$0xff] %v74
  %81 = vst [vmem:[%s4 + $0x18] sm:$0xff] %v76
  // Predicated region
  $region18: #{decoder_forward.14} parent=0 // pred_check
    _
  $region19: #{decoder_forward.14} parent=0 // pred_check_branch
    %83 = sbr.rel (0) target = $region21
  $region20: #{decoder_forward.14} parent=0 // pred_region
    _
  $region21: #{decoder_forward.14} parent=0 // pred_fallthru
    _
  // Predicated region
  $region22: #{decoder_forward.14} parent=0 // pred_check
    _
  $region23: #{decoder_forward.14} parent=0 // pred_check_branch
    %85 = sbr.rel (0) target = $region25
  $region24: #{decoder_forward.14} parent=0 // pred_region
    _
  $region25: #{decoder_forward.14} parent=0 // pred_fallthru
    _

// kernel: decoder_forward.15
$region0: #{decoder_forward.15}
  #allocation0 [shape = 'u32[]', space=smem, size = 0x4, offset = 0x4, fixed_abs, tag = 'smem constant byte address 0x4 - core index']
  #allocation1 [shape = 'u32[72,128]{1,0:T(1,128)}', space=vmem, size = 0x9000, scoped, tag = 'internal scratch']
  %s0 = inlined_call_operand.vmem [shape: f32[16,64], index: 0, kind: input, shape index: {}]
  %s1 = inlined_call_operand.vmem [shape: f32[1,64], index: 1, kind: output, shape index: {0}]
  %s2 = inlined_call_operand.vmem [shape: f32[1,64], index: 2, kind: output, shape index: {1}]
  %3 = xla_tuple %s1, %s2
  %s4 = sld [smem:[#allocation0]]
  $region26: #{decoder_forward.15} parent=0
    _
  %s6 = ssub.s32 1, %s4
  %s7 = scalar_select 0, %s6, %s4
  // Predicated region
  $region2: #{decoder_forward.15} parent=0 // pred_check
    _
  $region3: #{decoder_forward.15} parent=0 // pred_check_branch
    %9 = sbr.rel (0) target = $region5
  $region4: #{decoder_forward.15} parent=0 // pred_region
    _
  $region5: #{decoder_forward.15} parent=0 // pred_fallthru
    _
  %p10 = scmp.eq.s32.totalorder 0, 0
  // Predicated region
  $region6: #{decoder_forward.15} parent=0 // pred_check
    %p11 = pneg %p10
  $region7: #{decoder_forward.15} parent=0 // pred_check_branch
    %13 = sbr.rel (%p11) target = $region9
  $region8: #{decoder_forward.15} parent=0 // pred_region
    %vm14 = vcmask 516096
    %15 = vst.msk [vmem:[%s1] sm:$0x1] %vm14, 0.0
    %16 = vst.msk [vmem:[%s2] sm:$0x1] %vm14, 0.0
  $region9: #{decoder_forward.15} parent=0 // pred_fallthru
    _
  %v17 = vld [vmem:[%s0] sm:$0xff]
  %v18 = vld [vmem:[%s0 + $0x8] sm:$0xff]
  %v19 = vld [vmem:[%s1] sm:$0x1]
  %vm20 = vcmask 523264
  %v21 = vsel %vm20, %v17, 0.0
  %v22 = vsel %vm20, %v18, 0.0
  %v23 = vadd.f32 %v21, %v22
  %v24 = vrot.slane %v23, 4
  %v25 = vadd.f32 %v23, %v24
  %v26 = vrot.slane %v25, 2
  %v27 = vadd.f32 %v25, %v26
  %v28 = vrot.slane %v27, 1
  %v29 = vadd.f32 %v27, %v28
  %v30 = vadd.f32 %v19, %v29
  %vm31 = vcmask 516096
  %32 = vst.msk [vmem:[%s1] sm:$0x1] %vm31, %v30
  %v33 = vld [vmem:[%s2] sm:$0x1]
  %v34 = vmul.f32 %v17, %v17
  %v35 = vmul.f32 %v18, %v18
  %v36 = vsel %vm20, %v34, 0.0
  %v37 = vsel %vm20, %v35, 0.0
  %v38 = vadd.f32 %v36, %v37
  %v39 = vrot.slane %v38, 4
  %v40 = vadd.f32 %v38, %v39
  %v41 = vrot.slane %v40, 2
  %v42 = vadd.f32 %v40, %v41
  %v43 = vrot.slane %v42, 1
  %v44 = vadd.f32 %v42, %v43
  %v45 = vadd.f32 %v33, %v44
  %46 = vst.msk [vmem:[%s2] sm:$0x1] %vm31, %v45
  // Predicated region
  $region10: #{decoder_forward.15} parent=0 // pred_check
    _
  $region11: #{decoder_forward.15} parent=0 // pred_check_branch
    %48 = sbr.rel (0) target = $region13
  $region12: #{decoder_forward.15} parent=0 // pred_region
    _
  $region13: #{decoder_forward.15} parent=0 // pred_fallthru
    _
  // Predicated region
  $region14: #{decoder_forward.15} parent=0 // pred_check
    _
  $region15: #{decoder_forward.15} parent=0 // pred_check_branch
    %50 = sbr.rel (0) target = $region17
  $region16: #{decoder_forward.15} parent=0 // pred_region
    _
  $region17: #{decoder_forward.15} parent=0 // pred_fallthru
    _
  // Predicated region
  $region18: #{decoder_forward.15} parent=0 // pred_check
    _
  $region19: #{decoder_forward.15} parent=0 // pred_check_branch
    %52 = sbr.rel (0) target = $region21
  $region20: #{decoder_forward.15} parent=0 // pred_region
    _
  $region21: #{decoder_forward.15} parent=0 // pred_fallthru
    _
  // Predicated region
  $region22: #{decoder_forward.15} parent=0 // pred_check
    _
  $region23: #{decoder_forward.15} parent=0 // pred_check_branch
    %54 = sbr.rel (0) target = $region25
  $region24: #{decoder_forward.15} parent=0 // pred_region
    _
  $region25: #{decoder_forward.15} parent=0 // pred_fallthru
    _

// kernel: decoder_forward.16
$region0: #{decoder_forward.16}
  #allocation0 [shape = 'u32[]', space=smem, size = 0x4, offset = 0x4, fixed_abs, tag = 'smem constant byte address 0x4 - core index']
  #allocation1 [shape = 'u32[72,128]{1,0:T(1,128)}', space=vmem, size = 0x9000, scoped, tag = 'internal scratch']
  %s0 = inlined_call_operand.vmem [shape: f32[128,8], index: 0, kind: input, shape index: {}]
  %s1 = inlined_call_operand.vmem [shape: f32[1,8], index: 1, kind: input, shape index: {}]
  %s2 = inlined_call_operand.vmem [shape: f32[1,8], index: 2, kind: input, shape index: {}]
  %s3 = inlined_call_operand.vmem [shape: bf16[8,128], index: 3, kind: input, shape index: {}]
  %s4 = inlined_call_operand.vmem [shape: f32[128,128], index: 4, kind: output, shape index: {}]
  %s5 = sld [smem:[#allocation0]]
  $region26: #{decoder_forward.16} parent=0
    _
  %s7 = ssub.s32 1, %s5
  %s8 = scalar_select 0, %s7, %s5
  // Predicated region
  $region2: #{decoder_forward.16} parent=0 // pred_check
    _
  $region3: #{decoder_forward.16} parent=0 // pred_check_branch
    %10 = sbr.rel (0) target = $region5
  $region4: #{decoder_forward.16} parent=0 // pred_region
    _
  $region5: #{decoder_forward.16} parent=0 // pred_fallthru
    _
  // Predicated region
  $region6: #{decoder_forward.16} parent=0 // pred_check
    _
  $region7: #{decoder_forward.16} parent=0 // pred_check_branch
    %12 = sbr.rel (0) target = $region9
  $region8: #{decoder_forward.16} parent=0 // pred_region
    _
  $region9: #{decoder_forward.16} parent=0 // pred_fallthru
    _
  // Predicated region
  $region10: #{decoder_forward.16} parent=0 // pred_check
    _
  $region11: #{decoder_forward.16} parent=0 // pred_check_branch
    %14 = sbr.rel (0) target = $region13
  $region12: #{decoder_forward.16} parent=0 // pred_region
    _
  $region13: #{decoder_forward.16} parent=0 // pred_fallthru
    _
  // Predicated region
  $region14: #{decoder_forward.16} parent=0 // pred_check
    _
  $region15: #{decoder_forward.16} parent=0 // pred_check_branch
    %16 = sbr.rel (0) target = $region17
  $region16: #{decoder_forward.16} parent=0 // pred_region
    _
  $region17: #{decoder_forward.16} parent=0 // pred_fallthru
    _
  %v18 = vld [vmem:[%s0] sm:$0xff]
  %v19 = vld [vmem:[%s0 + $0x8] sm:$0xff]
  %v20 = vld [vmem:[%s0 + $0x10] sm:$0xff]
  %v21 = vld [vmem:[%s0 + $0x18] sm:$0xff]
  %v22 = vld [vmem:[%s0 + $0x20] sm:$0xff]
  %v23 = vld [vmem:[%s0 + $0x28] sm:$0xff]
  %v24 = vld [vmem:[%s0 + $0x30] sm:$0xff]
  %v25 = vld [vmem:[%s0 + $0x38] sm:$0xff]
  %v26 = vld [vmem:[%s0 + $0x40] sm:$0xff]
  %v27 = vld [vmem:[%s0 + $0x48] sm:$0xff]
  %v28 = vld [vmem:[%s0 + $0x50] sm:$0xff]
  %v29 = vld [vmem:[%s0 + $0x58] sm:$0xff]
  %v30 = vld [vmem:[%s0 + $0x60] sm:$0xff]
  %v31 = vld [vmem:[%s0 + $0x68] sm:$0xff]
  %v32 = vld [vmem:[%s0 + $0x70] sm:$0xff]
  %v33 = vld [vmem:[%s0 + $0x78] sm:$0xff]
  %v34 = vld [vmem:[%s1] sm:$0x1]
  %v36 = vperm.slane %v34, 0
  %v38 = vmul.f32 %v18, %v36
  %v39 = vmul.f32 %v19, %v36
  %v40 = vmul.f32 %v20, %v36
  %v41 = vmul.f32 %v21, %v36
  %v42 = vmul.f32 %v22, %v36
  %v43 = vmul.f32 %v23, %v36
  %v44 = vmul.f32 %v24, %v36
  %v45 = vmul.f32 %v25, %v36
  %v46 = vmul.f32 %v26, %v36
  %v47 = vmul.f32 %v27, %v36
  %v48 = vmul.f32 %v28, %v36
  %v49 = vmul.f32 %v29, %v36
  %v50 = vmul.f32 %v30, %v36
  %v51 = vmul.f32 %v31, %v36
  %v52 = vmul.f32 %v32, %v36
  %v53 = vmul.f32 %v33, %v36
  %v54 = vld [vmem:[%s2] sm:$0x1]
  %v56 = vperm.slane %v54, 0
  %v58 = vadd.f32 %v38, %v56
  %v59 = vadd.f32 %v39, %v56
  %v60 = vadd.f32 %v40, %v56
  %v61 = vadd.f32 %v41, %v56
  %v62 = vadd.f32 %v42, %v56
  %v63 = vadd.f32 %v43, %v56
  %v64 = vadd.f32 %v44, %v56
  %v65 = vadd.f32 %v45, %v56
  %v66 = vadd.f32 %v46, %v56
  %v67 = vadd.f32 %v47, %v56
  %v68 = vadd.f32 %v48, %v56
  %v69 = vadd.f32 %v49, %v56
  %v70 = vadd.f32 %v50, %v56
  %v71 = vadd.f32 %v51, %v56
  %v72 = vadd.f32 %v52, %v56
  %v73 = vadd.f32 %v53, %v56
  %v74 = vmax.f32 %v58, 0.0
  %v75 = vmax.f32 %v59, 0.0
  %v76 = vmax.f32 %v60, 0.0
  %v77 = vmax.f32 %v61, 0.0
  %v78 = vmax.f32 %v62, 0.0
  %v79 = vmax.f32 %v63, 0.0
  %v80 = vmax.f32 %v64, 0.0
  %v81 = vmax.f32 %v65, 0.0
  %v82 = vmax.f32 %v66, 0.0
  %v83 = vmax.f32 %v67, 0.0
  %v84 = vmax.f32 %v68, 0.0
  %v85 = vmax.f32 %v69, 0.0
  %v86 = vmax.f32 %v70, 0.0
  %v87 = vmax.f32 %v71, 0.0
  %v88 = vmax.f32 %v72, 0.0
  %v89 = vmax.f32 %v73, 0.0
  %v90 = vpack.c.bf16 %v75, %v74
  %v91 = vpack.c.bf16 %v77, %v76
  %v92 = vpack.c.bf16 %v79, %v78
  %v93 = vpack.c.bf16 %v81, %v80
  %v94 = vpack.c.bf16 %v83, %v82
  %v95 = vpack.c.bf16 %v85, %v84
  %v96 = vpack.c.bf16 %v87, %v86
  %v97 = vpack.c.bf16 %v89, %v88
  %v98 = vld [vmem:[%s3] sm:$0xf]
  %vm99 = vcmask 64512
  %v101 = vsel %vm99, %v90, 0
  %v104 = vsel %vm99, %v91, 0
  %v107 = vsel %vm99, %v92, 0
  %v110 = vsel %vm99, %v93, 0
  %v113 = vsel %vm99, %v94, 0
  %v116 = vsel %vm99, %v95, 0
  %v119 = vsel %vm99, %v96, 0
  %v122 = vsel %vm99, %v97, 0
  %vm124 = vcmask 1043456
  %v126 = vsel %vm124, %v98, 0
  %128 = vmatpush.bf16.msra.mxu0 0
  %129 = vmatpush.bf16.msra.mxu0 0
  %130 = vmatpush.bf16.msra.mxu0 0
  %131 = vmatpush.bf16.msra.mxu0 0
  %132 = vmatpush.bf16.msra.mxu0 0
  %133 = vmatpush.bf16.msra.mxu0 0
  %134 = vmatpush.bf16.msra.mxu0 0
  %135 = vmatpush.bf16.msra.mxu0 %v126
  %136 = vmatmul.bf16.gmra.mxu0 %v101
  %v137 = vpop.f32.mrf.mxu0
  %v138 = vadd.f32 0.0, %v137
  %v139 = vpop.f32.mrf.mxu0
  %v140 = vadd.f32 0.0, %v139
  %141 = vmatmul.bf16.gmra.mxu0 %v104
  %v142 = vpop.f32.mrf.mxu0
  %v143 = vadd.f32 0.0, %v142
  %v144 = vpop.f32.mrf.mxu0
  %v145 = vadd.f32 0.0, %v144
  %146 = vmatmul.bf16.gmra.mxu0 %v107
  %v147 = vpop.f32.mrf.mxu0
  %v148 = vadd.f32 0.0, %v147
  %v149 = vpop.f32.mrf.mxu0
  %v150 = vadd.f32 0.0, %v149
  %151 = vmatmul.bf16.gmra.mxu0 %v110
  %v152 = vpop.f32.mrf.mxu0
  %v153 = vadd.f32 0.0, %v152
  %v154 = vpop.f32.mrf.mxu0
  %v155 = vadd.f32 0.0, %v154
  %156 = vmatmul.bf16.gmra.mxu0 %v113
  %v157 = vpop.f32.mrf.mxu0
  %v158 = vadd.f32 0.0, %v157
  %v159 = vpop.f32.mrf.mxu0
  %v160 = vadd.f32 0.0, %v159
  %161 = vmatmul.bf16.gmra.mxu0 %v116
  %v162 = vpop.f32.mrf.mxu0
  %v163 = vadd.f32 0.0, %v162
  %v164 = vpop.f32.mrf.mxu0
  %v165 = vadd.f32 0.0, %v164
  %166 = vmatmul.bf16.gmra.mxu0 %v119
  %v167 = vpop.f32.mrf.mxu0
  %v168 = vadd.f32 0.0, %v167
  %v169 = vpop.f32.mrf.mxu0
  %v170 = vadd.f32 0.0, %v169
  %171 = vmatmul.bf16.gmra.mxu0 %v122
  %v172 = vpop.f32.mrf.mxu0
  %v173 = vadd.f32 0.0, %v172
  %v174 = vpop.f32.mrf.mxu0
  %v175 = vadd.f32 0.0, %v174
  %176 = vdwg.mxu0
  %177 = vst [vmem:[%s4] sm:$0xff] %v138
  %178 = vst [vmem:[%s4 + $0x8] sm:$0xff] %v140
  %179 = vst [vmem:[%s4 + $0x10] sm:$0xff] %v143
  %180 = vst [vmem:[%s4 + $0x18] sm:$0xff] %v145
  %181 = vst [vmem:[%s4 + $0x20] sm:$0xff] %v148
  %182 = vst [vmem:[%s4 + $0x28] sm:$0xff] %v150
  %183 = vst [vmem:[%s4 + $0x30] sm:$0xff] %v153
  %184 = vst [vmem:[%s4 + $0x38] sm:$0xff] %v155
  %185 = vst [vmem:[%s4 + $0x40] sm:$0xff] %v158
  %186 = vst [vmem:[%s4 + $0x48] sm:$0xff] %v160
  %187 = vst [vmem:[%s4 + $0x50] sm:$0xff] %v163
  %188 = vst [vmem:[%s4 + $0x58] sm:$0xff] %v165
  %189 = vst [vmem:[%s4 + $0x60] sm:$0xff] %v168
  %190 = vst [vmem:[%s4 + $0x68] sm:$0xff] %v170
  %191 = vst [vmem:[%s4 + $0x70] sm:$0xff] %v173
  %192 = vst [vmem:[%s4 + $0x78] sm:$0xff] %v175
  // Predicated region
  $region18: #{decoder_forward.16} parent=0 // pred_check
    _
  $region19: #{decoder_forward.16} parent=0 // pred_check_branch
    %194 = sbr.rel (0) target = $region21
  $region20: #{decoder_forward.16} parent=0 // pred_region
    _
  $region21: #{decoder_forward.16} parent=0 // pred_fallthru
    _
  // Predicated region
  $region22: #{decoder_forward.16} parent=0 // pred_check
    _
  $region23: #{decoder_forward.16} parent=0 // pred_check_branch
    %196 = sbr.rel (0) target = $region25
  $region24: #{decoder_forward.16} parent=0 // pred_region
    _
  $region25: #{decoder_forward.16} parent=0 // pred_fallthru
    _

// kernel: decoder_forward.17
$region0: #{decoder_forward.17}
  #allocation0 [shape = 'u32[]', space=smem, size = 0x4, offset = 0x4, fixed_abs, tag = 'smem constant byte address 0x4 - core index']
  #allocation1 [shape = 'u32[72,128]{1,0:T(1,128)}', space=vmem, size = 0x9000, scoped, tag = 'internal scratch']
  %s0 = inlined_call_operand.vmem [shape: f32[32,64], index: 0, kind: input, shape index: {}]
  %s1 = inlined_call_operand.vmem [shape: f32[1,64], index: 1, kind: output, shape index: {0}]
  %s2 = inlined_call_operand.vmem [shape: f32[1,64], index: 2, kind: output, shape index: {1}]
  %3 = xla_tuple %s1, %s2
  %s4 = sld [smem:[#allocation0]]
  $region26: #{decoder_forward.17} parent=0
    _
  %s6 = ssub.s32 1, %s4
  %s7 = scalar_select 0, %s6, %s4
  // Predicated region
  $region2: #{decoder_forward.17} parent=0 // pred_check
    _
  $region3: #{decoder_forward.17} parent=0 // pred_check_branch
    %9 = sbr.rel (0) target = $region5
  $region4: #{decoder_forward.17} parent=0 // pred_region
    _
  $region5: #{decoder_forward.17} parent=0 // pred_fallthru
    _
  %p10 = scmp.eq.s32.totalorder 0, 0
  // Predicated region
  $region6: #{decoder_forward.17} parent=0 // pred_check
    %p11 = pneg %p10
  $region7: #{decoder_forward.17} parent=0 // pred_check_branch
    %13 = sbr.rel (%p11) target = $region9
  $region8: #{decoder_forward.17} parent=0 // pred_region
    %vm14 = vcmask 516096
    %15 = vst.msk [vmem:[%s1] sm:$0x1] %vm14, 0.0
    %16 = vst.msk [vmem:[%s2] sm:$0x1] %vm14, 0.0
  $region9: #{decoder_forward.17} parent=0 // pred_fallthru
    _
  %v17 = vld [vmem:[%s0] sm:$0xff]
  %v18 = vld [vmem:[%s0 + $0x8] sm:$0xff]
  %v19 = vld [vmem:[%s0 + $0x10] sm:$0xff]
  %v20 = vld [vmem:[%s0 + $0x18] sm:$0xff]
  %v21 = vld [vmem:[%s1] sm:$0x1]
  %vm22 = vcmask 523264
  %v23 = vsel %vm22, %v17, 0.0
  %v24 = vsel %vm22, %v18, 0.0
  %v25 = vadd.f32 %v23, %v24
  %v26 = vsel %vm22, %v19, 0.0
  %v27 = vadd.f32 %v25, %v26
  %v28 = vsel %vm22, %v20, 0.0
  %v29 = vadd.f32 %v27, %v28
  %v30 = vrot.slane %v29, 4
  %v31 = vadd.f32 %v29, %v30
  %v32 = vrot.slane %v31, 2
  %v33 = vadd.f32 %v31, %v32
  %v34 = vrot.slane %v33, 1
  %v35 = vadd.f32 %v33, %v34
  %v36 = vadd.f32 %v21, %v35
  %vm37 = vcmask 516096
  %38 = vst.msk [vmem:[%s1] sm:$0x1] %vm37, %v36
  %v39 = vld [vmem:[%s2] sm:$0x1]
  %v40 = vmul.f32 %v17, %v17
  %v41 = vmul.f32 %v18, %v18
  %v42 = vmul.f32 %v19, %v19
  %v43 = vmul.f32 %v20, %v20
  %v44 = vsel %vm22, %v40, 0.0
  %v45 = vsel %vm22, %v41, 0.0
  %v46 = vadd.f32 %v44, %v45
  %v47 = vsel %vm22, %v42, 0.0
  %v48 = vadd.f32 %v46, %v47
  %v49 = vsel %vm22, %v43, 0.0
  %v50 = vadd.f32 %v48, %v49
  %v51 = vrot.slane %v50, 4
  %v52 = vadd.f32 %v50, %v51
  %v53 = vrot.slane %v52, 2
  %v54 = vadd.f32 %v52, %v53
  %v55 = vrot.slane %v54, 1
  %v56 = vadd.f32 %v54, %v55
  %v57 = vadd.f32 %v39, %v56
  %58 = vst.msk [vmem:[%s2] sm:$0x1] %vm37, %v57
  // Predicated region
  $region10: #{decoder_forward.17} parent=0 // pred_check
    _
  $region11: #{decoder_forward.17} parent=0 // pred_check_branch
    %60 = sbr.rel (0) target = $region13
  $region12: #{decoder_forward.17} parent=0 // pred_region
    _
  $region13: #{decoder_forward.17} parent=0 // pred_fallthru
    _
  // Predicated region
  $region14: #{decoder_forward.17} parent=0 // pred_check
    _
  $region15: #{decoder_forward.17} parent=0 // pred_check_branch
    %62 = sbr.rel (0) target = $region17
  $region16: #{decoder_forward.17} parent=0 // pred_region
    _
  $region17: #{decoder_forward.17} parent=0 // pred_fallthru
    _
  // Predicated region
  $region18: #{decoder_forward.17} parent=0 // pred_check
    _
  $region19: #{decoder_forward.17} parent=0 // pred_check_branch
    %64 = sbr.rel (0) target = $region21
  $region20: #{decoder_forward.17} parent=0 // pred_region
    _
  $region21: #{decoder_forward.17} parent=0 // pred_fallthru
    _
  // Predicated region
  $region22: #{decoder_forward.17} parent=0 // pred_check
    _
  $region23: #{decoder_forward.17} parent=0 // pred_check_branch
    %66 = sbr.rel (0) target = $region25
  $region24: #{decoder_forward.17} parent=0 // pred_region
    _
  $region25: #{decoder_forward.17} parent=0 // pred_fallthru
    _

// kernel: decoder_forward.18
$region0: #{decoder_forward.18}
  #allocation0 [shape = 'u32[]', space=smem, size = 0x4, offset = 0x4, fixed_abs, tag = 'smem constant byte address 0x4 - core index']
  #allocation1 [shape = 'u32[72,128]{1,0:T(1,128)}', space=vmem, size = 0x9000, scoped, tag = 'internal scratch']
  %s0 = inlined_call_operand.vmem [shape: f32[512,4], index: 0, kind: input, shape index: {}]
  %s1 = inlined_call_operand.vmem [shape: f32[1,4], index: 1, kind: input, shape index: {}]
  %s2 = inlined_call_operand.vmem [shape: f32[1,4], index: 2, kind: input, shape index: {}]
  %s3 = inlined_call_operand.vmem [shape: bf16[4,128], index: 3, kind: input, shape index: {}]
  %s4 = inlined_call_operand.vmem [shape: f32[512,128], index: 4, kind: output, shape index: {}]
  %s5 = sld [smem:[#allocation0]]
  $region49: #{decoder_forward.18} parent=0
    _
  %s7 = ssub.s32 1, %s5
  %s8 = scalar_select 0, %s7, %s5
  loop: start=0, step=1, limit=4
  $region2: #{decoder_forward.18} parent=0 // loop_pre_header
    _
  $region3: #{decoder_forward.18} parent=0 // loop_header
    %s10 = sphi 0, %s14
    %p11 = scmp.ge.s32.totalorder %s10, 4
    %s20 = sphi 0, %s22
    %s23 = sphi 0, %s20
    %s24 = sphi 0, %s23
    %s40 = sphi 0, %s24
    %s44 = sphi 0, %s44
    %s46 = sphi 0, %s44
    %s47 = sphi 0, %s46
    %s61 = sphi 0, %s47
    %s65 = sphi 0, %s65
    %s67 = sphi 0, %s65
    %s68 = sphi 0, %s67
    %s82 = sphi 0, %s68
    %s86 = sphi 0, %s86
    %s88 = sphi 0, %s86
    %s89 = sphi 0, %s88
    %s103 = sphi 0, %s89
    %s109 = sphi 0, %s111
    %s112 = sphi 0, %s109
    %s113 = sphi 0, %s112
    %s129 = sphi 0, %s113
  $region4: #{decoder_forward.18} parent=0 // loop_header_branch
    %13 = sbr.rel (%p11) target = $region8
  $region5: #{decoder_forward.18} parent=0 // loop_body
    %s15 = ssub.s32 %s10, 1
    %s16 = ssub.s32 %s10, 2
    %s17 = sadd.s32 %s10, 1
    %s18 = ssub.s32 %s10, %s17
    %p19 = scmp.eq.s32.totalorder %s18, 0
    %s21 = sadd.s32 %s20, 1
    %s22 = scalar_select %p19, %s20, %s21
    %p25 = pneg %p19
    %p26 = scmp.eq.s32.totalorder %s10, 1
    %p27 = por %p25, %p26
    %p28 = scmp.ne.s32.totalorder %s20, %s23
    %p29 = scmp.eq.s32.totalorder %s10, 0
    %p30 = por %p28, %p29
    %p31 = scmp.ne.s32.totalorder %s20, %s23
    %p32 = scmp.eq.s32.totalorder %s15, 1
    %p33 = por %p31, %p32
    %p34 = scmp.ne.s32.totalorder %s23, %s24
    %p35 = scmp.eq.s32.totalorder %s15, 0
    %p36 = por %p34, %p35
    %p37 = scmp.ne.s32.totalorder %s23, %s24
    %p38 = scmp.eq.s32.totalorder %s16, 1
    %p39 = por %p37, %p38
    %p41 = scmp.ne.s32.totalorder %s24, %s40
    %p42 = scmp.eq.s32.totalorder %s16, 0
    %p43 = por %p41, %p42
    %s45 = sadd.s32 %s44, 1
    %p48 = scmp.eq.s32.totalorder %s10, 1
    %p49 = scmp.ne.s32.totalorder %s44, %s46
    %p50 = scmp.eq.s32.totalorder %s10, 0
    %p51 = por %p49, %p50
    %p52 = scmp.ne.s32.totalorder %s44, %s46
    %p53 = scmp.eq.s32.totalorder %s15, 1
    %p54 = por %p52, %p53
    %p55 = scmp.ne.s32.totalorder %s46, %s47
    %p56 = scmp.eq.s32.totalorder %s15, 0
    %p57 = por %p55, %p56
    %p58 = scmp.ne.s32.totalorder %s46, %s47
    %p59 = scmp.eq.s32.totalorder %s16, 1
    %p60 = por %p58, %p59
    %p62 = scmp.ne.s32.totalorder %s47, %s61
    %p63 = scmp.eq.s32.totalorder %s16, 0
    %p64 = por %p62, %p63
    %s66 = sadd.s32 %s65, 1
    %p69 = scmp.eq.s32.totalorder %s10, 1
    %p70 = scmp.ne.s32.totalorder %s65, %s67
    %p71 = scmp.eq.s32.totalorder %s10, 0
    %p72 = por %p70, %p71
    %p73 = scmp.ne.s32.totalorder %s65, %s67
    %p74 = scmp.eq.s32.totalorder %s15, 1
    %p75 = por %p73, %p74
    %p76 = scmp.ne.s32.totalorder %s67, %s68
    %p77 = scmp.eq.s32.totalorder %s15, 0
    %p78 = por %p76, %p77
    %p79 = scmp.ne.s32.totalorder %s67, %s68
    %p80 = scmp.eq.s32.totalorder %s16, 1
    %p81 = por %p79, %p80
    %p83 = scmp.ne.s32.totalorder %s68, %s82
    %p84 = scmp.eq.s32.totalorder %s16, 0
    %p85 = por %p83, %p84
    %s87 = sadd.s32 %s86, 1
    %p90 = scmp.eq.s32.totalorder %s10, 1
    %p91 = scmp.ne.s32.totalorder %s86, %s88
    %p92 = scmp.eq.s32.totalorder %s10, 0
    %p93 = por %p91, %p92
    %p94 = scmp.ne.s32.totalorder %s86, %s88
    %p95 = scmp.eq.s32.totalorder %s15, 1
    %p96 = por %p94, %p95
    %p97 = scmp.ne.s32.totalorder %s88, %s89
    %p98 = scmp.eq.s32.totalorder %s15, 0
    %p99 = por %p97, %p98
    %p100 = scmp.ne.s32.totalorder %s88, %s89
    %p101 = scmp.eq.s32.totalorder %s16, 1
    %p102 = por %p100, %p101
    %p104 = scmp.ne.s32.totalorder %s89, %s103
    %p105 = scmp.eq.s32.totalorder %s16, 0
    %p106 = por %p104, %p105
    %s107 = ssub.s32 %s10, %s17
    %p108 = scmp.eq.s32.totalorder %s107, 0
    %s110 = sadd.s32 %s109, 1
    %s111 = scalar_select %p108, %s109, %s110
    %p114 = pneg %p108
    %p115 = scmp.eq.s32.totalorder %s10, 1
    %p116 = por %p114, %p115
    %p117 = scmp.ne.s32.totalorder %s109, %s112
    %p118 = scmp.eq.s32.totalorder %s10, 0
    %p119 = por %p117, %p118
    %p120 = scmp.ne.s32.totalorder %s109, %s112
    %p121 = scmp.eq.s32.totalorder %s15, 1
    %p122 = por %p120, %p121
    %p123 = scmp.ne.s32.totalorder %s112, %s113
    %p124 = scmp.eq.s32.totalorder %s15, 0
    %p125 = por %p123, %p124
    %p126 = scmp.ne.s32.totalorder %s112, %s113
    %p127 = scmp.eq.s32.totalorder %s16, 1
    %p128 = por %p126, %p127
    %p130 = scmp.ne.s32.totalorder %s113, %s129
    %p131 = scmp.eq.s32.totalorder %s16, 0
    %p132 = por %p130, %p131
    %p133 = scmp.le.s32.totalorder 1, %s10
    %p134 = scmp.lt.s32.totalorder %s10, 3
    %p135 = pnand %p133, %p134
    %p136 = pneg %p135
    // Predicated region
    $region9: #{decoder_forward.18} parent=5 // pred_check
      _
    $region10: #{decoder_forward.18} parent=5 // pred_check_branch
      %138 = sbr.rel (%p135) target = $region12
    $region11: #{decoder_forward.18} parent=5 // pred_region
      %s139 = ssub.s32 %s10, 1
      // Predicated region
      $region13: #{decoder_forward.18} parent=11 // pred_check
        %p140 = pneg %p57
      $region14: #{decoder_forward.18} parent=11 // pred_check_branch
        %142 = sbr.rel (%p140) target = $region16
      $region15: #{decoder_forward.18} parent=11 // pred_region
        _
      $region16: #{decoder_forward.18} parent=11 // pred_fallthru
        _
      // Predicated region
      $region17: #{decoder_forward.18} parent=11 // pred_check
        %p143 = pneg %p78
      $region18: #{decoder_forward.18} parent=11 // pred_check_branch
        %145 = sbr.rel (%p143) target = $region20
      $region19: #{decoder_forward.18} parent=11 // pred_region
        _
      $region20: #{decoder_forward.18} parent=11 // pred_fallthru
        _
      // Predicated region
      $region21: #{decoder_forward.18} parent=11 // pred_check
        %p146 = pneg %p99
      $region22: #{decoder_forward.18} parent=11 // pred_check_branch
        %148 = sbr.rel (%p146) target = $region24
      $region23: #{decoder_forward.18} parent=11 // pred_region
        _
      $region24: #{decoder_forward.18} parent=11 // pred_fallthru
        _
    $region12: #{decoder_forward.18} parent=5 // pred_fallthru
      _
    %p149 = scmp.lt.s32.totalorder %s10, 2
    // Predicated region
    $region25: #{decoder_forward.18} parent=5 // pred_check
      %p150 = pneg %p149
    $region26: #{decoder_forward.18} parent=5 // pred_check_branch
      %152 = sbr.rel (%p150) target = $region28
    $region27: #{decoder_forward.18} parent=5 // pred_region
      // Predicated region
      $region29: #{decoder_forward.18} parent=27 // pred_check
        %p153 = pneg %p30
      $region30: #{decoder_forward.18} parent=27 // pred_check_branch
        %155 = sbr.rel (%p153) target = $region32
      $region31: #{decoder_forward.18} parent=27 // pred_region
        %s156 = smul.u32 32, %s10
        %p157 = scmp.lt.s32.totalorder %s156, 63
        %s158 = scalar_select %p157, %s156, 63
        %s159 = smul.addr %s158, 8
        %s160 = scalar_lea.vmem %s0, %s159
        %s161 = smul.u32 32, %s10
      $region32: #{decoder_forward.18} parent=27 // pred_fallthru
        _
    $region28: #{decoder_forward.18} parent=5 // pred_fallthru
      _
    %p162 = scmp.le.s32.totalorder 1, %s10
    %p163 = scmp.lt.s32.totalorder %s10, 3
    %p164 = pnand %p162, %p163
    %p165 = pneg %p164
    // Predicated region
    $region33: #{decoder_forward.18} parent=5 // pred_check
      _
    $region34: #{decoder_forward.18} parent=5 // pred_check_branch
      %167 = sbr.rel (%p164) target = $region36
    $region35: #{decoder_forward.18} parent=5 // pred_region
      %s168 = ssub.s32 %s10, 1
      %s169 = smul.u32 32, %s15
      %p170 = scmp.lt.s32.totalorder %s169, 63
      %s171 = scalar_select %p170, %s169, 63
      %s172 = smul.addr %s171, 8
      %s173 = scalar_lea.vmem %s0, %s172
      %p174 = pneg %p36
      %p175 = pneg %p33
      %p176 = pneg %p57
      %p177 = pneg %p54
      %p178 = pneg %p78
      %p179 = pneg %p75
      %p180 = pneg %p99
      %p181 = pneg %p96
      %p182 = pneg %p125
      %p183 = pneg %p122
      %s184 = smul.u32 32, %s15
      %p185 = scmp.lt.s32.totalorder %s184, 63
      %s186 = scalar_select %p185, %s184, 63
      %s187 = smul.addr %s186, 8
      %s188 = scalar_lea.vmem %s4, %s187
      %s189 = smul.u32 32, %s15
      %p190 = scmp.lt.s32.totalorder %s189, 63
      %s191 = scalar_select %p190, %s189, 63
      %s192 = smul.addr %s191, 8
      %s193 = scalar_lea.vmem %s0, %s192
      %s194 = smul.u32 32, %s15
      %s195 = smul.u32 32, %s15
      %p196 = scmp.lt.s32.totalorder %s195, 63
      %s197 = scalar_select %p196, %s195, 63
      %s198 = smul.addr %s197, 8
      %s199 = scalar_lea.vmem %s4, %s198
      %s200 = smul.u32 32, %s15
      %v202 = vld [vmem:[%s193] sm:$0xff]
      %v203 = vld [vmem:[%s193 + $0x8] sm:$0xff]
      %v204 = vld [vmem:[%s193 + $0x10] sm:$0xff]
      %v205 = vld [vmem:[%s193 + $0x18] sm:$0xff]
      %v206 = vld [vmem:[%s193 + $0x20] sm:$0xff]
      %v207 = vld [vmem:[%s193 + $0x28] sm:$0xff]
      %v208 = vld [vmem:[%s193 + $0x30] sm:$0xff]
      %v209 = vld [vmem:[%s193 + $0x38] sm:$0xff]
      %v210 = vld [vmem:[%s193 + $0x40] sm:$0xff]
      %v211 = vld [vmem:[%s193 + $0x48] sm:$0xff]
      %v212 = vld [vmem:[%s193 + $0x50] sm:$0xff]
      %v213 = vld [vmem:[%s193 + $0x58] sm:$0xff]
      %v214 = vld [vmem:[%s193 + $0x60] sm:$0xff]
      %v215 = vld [vmem:[%s193 + $0x68] sm:$0xff]
      %v216 = vld [vmem:[%s193 + $0x70] sm:$0xff]
      %v217 = vld [vmem:[%s193 + $0x78] sm:$0xff]
      %v218 = vld [vmem:[%s193 + $0x80] sm:$0xff]
      %v219 = vld [vmem:[%s193 + $0x88] sm:$0xff]
      %v220 = vld [vmem:[%s193 + $0x90] sm:$0xff]
      %v221 = vld [vmem:[%s193 + $0x98] sm:$0xff]
      %v222 = vld [vmem:[%s193 + $0xa0] sm:$0xff]
      %v223 = vld [vmem:[%s193 + $0xa8] sm:$0xff]
      %v224 = vld [vmem:[%s193 + $0xb0] sm:$0xff]
      %v225 = vld [vmem:[%s193 + $0xb8] sm:$0xff]
      %v226 = vld [vmem:[%s193 + $0xc0] sm:$0xff]
      %v227 = vld [vmem:[%s193 + $0xc8] sm:$0xff]
      %v228 = vld [vmem:[%s193 + $0xd0] sm:$0xff]
      %v229 = vld [vmem:[%s193 + $0xd8] sm:$0xff]
      %v230 = vld [vmem:[%s193 + $0xe0] sm:$0xff]
      %v231 = vld [vmem:[%s193 + $0xe8] sm:$0xff]
      %v232 = vld [vmem:[%s193 + $0xf0] sm:$0xff]
      %v233 = vld [vmem:[%s193 + $0xf8] sm:$0xff]
      %v234 = vld [vmem:[%s1] sm:$0x1]
      %v236 = vperm.slane %v234, 0
      %v238 = vmul.f32 %v202, %v236
      %v239 = vmul.f32 %v203, %v236
      %v240 = vmul.f32 %v204, %v236
      %v241 = vmul.f32 %v205, %v236
      %v242 = vmul.f32 %v206, %v236
      %v243 = vmul.f32 %v207, %v236
      %v244 = vmul.f32 %v208, %v236
      %v245 = vmul.f32 %v209, %v236
      %v246 = vmul.f32 %v210, %v236
      %v247 = vmul.f32 %v211, %v236
      %v248 = vmul.f32 %v212, %v236
      %v249 = vmul.f32 %v213, %v236
      %v250 = vmul.f32 %v214, %v236
      %v251 = vmul.f32 %v215, %v236
      %v252 = vmul.f32 %v216, %v236
      %v253 = vmul.f32 %v217, %v236
      %v254 = vmul.f32 %v218, %v236
      %v255 = vmul.f32 %v219, %v236
      %v256 = vmul.f32 %v220, %v236
      %v257 = vmul.f32 %v221, %v236
      %v258 = vmul.f32 %v222, %v236
      %v259 = vmul.f32 %v223, %v236
      %v260 = vmul.f32 %v224, %v236
      %v261 = vmul.f32 %v225, %v236
      %v262 = vmul.f32 %v226, %v236
      %v263 = vmul.f32 %v227, %v236
      %v264 = vmul.f32 %v228, %v236
      %v265 = vmul.f32 %v229, %v236
      %v266 = vmul.f32 %v230, %v236
      %v267 = vmul.f32 %v231, %v236
      %v268 = vmul.f32 %v232, %v236
      %v269 = vmul.f32 %v233, %v236
      %v270 = vld [vmem:[%s2] sm:$0x1]
      %v272 = vperm.slane %v270, 0
      %v274 = vadd.f32 %v238, %v272
      %v275 = vadd.f32 %v239, %v272
      %v276 = vadd.f32 %v240, %v272
      %v277 = vadd.f32 %v241, %v272
      %v278 = vadd.f32 %v242, %v272
      %v279 = vadd.f32 %v243, %v272
      %v280 = vadd.f32 %v244, %v272
      %v281 = vadd.f32 %v245, %v272
      %v282 = vadd.f32 %v246, %v272
      %v283 = vadd.f32 %v247, %v272
      %v284 = vadd.f32 %v248, %v272
      %v285 = vadd.f32 %v249, %v272
      %v286 = vadd.f32 %v250, %v272
      %v287 = vadd.f32 %v251, %v272
      %v288 = vadd.f32 %v252, %v272
      %v289 = vadd.f32 %v253, %v272
      %v290 = vadd.f32 %v254, %v272
      %v291 = vadd.f32 %v255, %v272
      %v292 = vadd.f32 %v256, %v272
      %v293 = vadd.f32 %v257, %v272
      %v294 = vadd.f32 %v258, %v272
      %v295 = vadd.f32 %v259, %v272
      %v296 = vadd.f32 %v260, %v272
      %v297 = vadd.f32 %v261, %v272
      %v298 = vadd.f32 %v262, %v272
      %v299 = vadd.f32 %v263, %v272
      %v300 = vadd.f32 %v264, %v272
      %v301 = vadd.f32 %v265, %v272
      %v302 = vadd.f32 %v266, %v272
      %v303 = vadd.f32 %v267, %v272
      %v304 = vadd.f32 %v268, %v272
      %v305 = vadd.f32 %v269, %v272
      %v306 = vmax.f32 %v274, 0.0
      %v307 = vmax.f32 %v275, 0.0
      %v308 = vmax.f32 %v276, 0.0
      %v309 = vmax.f32 %v277, 0.0
      %v310 = vmax.f32 %v278, 0.0
      %v311 = vmax.f32 %v279, 0.0
      %v312 = vmax.f32 %v280, 0.0
      %v313 = vmax.f32 %v281, 0.0
      %v314 = vmax.f32 %v282, 0.0
      %v315 = vmax.f32 %v283, 0.0
      %v316 = vmax.f32 %v284, 0.0
      %v317 = vmax.f32 %v285, 0.0
      %v318 = vmax.f32 %v286, 0.0
      %v319 = vmax.f32 %v287, 0.0
      %v320 = vmax.f32 %v288, 0.0
      %v321 = vmax.f32 %v289, 0.0
      %v322 = vmax.f32 %v290, 0.0
      %v323 = vmax.f32 %v291, 0.0
      %v324 = vmax.f32 %v292, 0.0
      %v325 = vmax.f32 %v293, 0.0
      %v326 = vmax.f32 %v294, 0.0
      %v327 = vmax.f32 %v295, 0.0
      %v328 = vmax.f32 %v296, 0.0
      %v329 = vmax.f32 %v297, 0.0
      %v330 = vmax.f32 %v298, 0.0
      %v331 = vmax.f32 %v299, 0.0
      %v332 = vmax.f32 %v300, 0.0
      %v333 = vmax.f32 %v301, 0.0
      %v334 = vmax.f32 %v302, 0.0
      %v335 = vmax.f32 %v303, 0.0
      %v336 = vmax.f32 %v304, 0.0
      %v337 = vmax.f32 %v305, 0.0
      %v338 = vpack.c.bf16 %v307, %v306
      %v339 = vpack.c.bf16 %v309, %v308
      %v340 = vpack.c.bf16 %v311, %v310
      %v341 = vpack.c.bf16 %v313, %v312
      %v342 = vpack.c.bf16 %v315, %v314
      %v343 = vpack.c.bf16 %v317, %v316
      %v344 = vpack.c.bf16 %v319, %v318
      %v345 = vpack.c.bf16 %v321, %v320
      %v346 = vpack.c.bf16 %v323, %v322
      %v347 = vpack.c.bf16 %v325, %v324
      %v348 = vpack.c.bf16 %v327, %v326
      %v349 = vpack.c.bf16 %v329, %v328
      %v350 = vpack.c.bf16 %v331, %v330
      %v351 = vpack.c.bf16 %v333, %v332
      %v352 = vpack.c.bf16 %v335, %v334
      %v353 = vpack.c.bf16 %v337, %v336
      %v354 = vld [vmem:[%s3] sm:$0x3]
      %vm355 = vcmask 31744
      %v357 = vsel %vm355, %v338, 0
      %v360 = vsel %vm355, %v339, 0
      %v363 = vsel %vm355, %v340, 0
      %v366 = vsel %vm355, %v341, 0
      %v369 = vsel %vm355, %v342, 0
      %v372 = vsel %vm355, %v343, 0
      %v375 = vsel %vm355, %v344, 0
      %v378 = vsel %vm355, %v345, 0
      %v381 = vsel %vm355, %v346, 0
      %v384 = vsel %vm355, %v347, 0
      %v387 = vsel %vm355, %v348, 0
      %v390 = vsel %vm355, %v349, 0
      %v393 = vsel %vm355, %v350, 0
      %v396 = vsel %vm355, %v351, 0
      %v399 = vsel %vm355, %v352, 0
      %v402 = vsel %vm355, %v353, 0
      %vm404 = vcmask 1041408
      %v406 = vsel %vm404, %v354, 0
      %408 = vmatpush.bf16.msra.mxu0 0
      %409 = vmatpush.bf16.msra.mxu0 0
      %410 = vmatpush.bf16.msra.mxu0 0
      %411 = vmatpush.bf16.msra.mxu0 0
      %412 = vmatpush.bf16.msra.mxu0 0
      %413 = vmatpush.bf16.msra.mxu0 0
      %414 = vmatpush.bf16.msra.mxu0 0
      %415 = vmatpush.bf16.msra.mxu0 %v406
      %416 = vmatmul.bf16.gmra.mxu0 %v357
      %v417 = vpop.f32.mrf.mxu0
      %v418 = vadd.f32 0.0, %v417
      %v419 = vpop.f32.mrf.mxu0
      %v420 = vadd.f32 0.0, %v419
      %421 = vmatmul.bf16.gmra.mxu0 %v360
      %v422 = vpop.f32.mrf.mxu0
      %v423 = vadd.f32 0.0, %v422
      %v424 = vpop.f32.mrf.mxu0
      %v425 = vadd.f32 0.0, %v424
      %426 = vmatmul.bf16.gmra.mxu0 %v363
      %v427 = vpop.f32.mrf.mxu0
      %v428 = vadd.f32 0.0, %v427
      %v429 = vpop.f32.mrf.mxu0
      %v430 = vadd.f32 0.0, %v429
      %431 = vmatmul.bf16.gmra.mxu0 %v366
      %v432 = vpop.f32.mrf.mxu0
      %v433 = vadd.f32 0.0, %v432
      %v434 = vpop.f32.mrf.mxu0
      %v435 = vadd.f32 0.0, %v434
      %436 = vmatmul.bf16.gmra.mxu0 %v369
      %v437 = vpop.f32.mrf.mxu0
      %v438 = vadd.f32 0.0, %v437
      %v439 = vpop.f32.mrf.mxu0
      %v440 = vadd.f32 0.0, %v439
      %441 = vmatmul.bf16.gmra.mxu0 %v372
      %v442 = vpop.f32.mrf.mxu0
      %v443 = vadd.f32 0.0, %v442
      %v444 = vpop.f32.mrf.mxu0
      %v445 = vadd.f32 0.0, %v444
      %446 = vmatmul.bf16.gmra.mxu0 %v375
      %v447 = vpop.f32.mrf.mxu0
      %v448 = vadd.f32 0.0, %v447
      %v449 = vpop.f32.mrf.mxu0
      %v450 = vadd.f32 0.0, %v449
      %451 = vmatmul.bf16.gmra.mxu0 %v378
      %v452 = vpop.f32.mrf.mxu0
      %v453 = vadd.f32 0.0, %v452
      %v454 = vpop.f32.mrf.mxu0
      %v455 = vadd.f32 0.0, %v454
      %456 = vmatmul.bf16.gmra.mxu0 %v381
      %v457 = vpop.f32.mrf.mxu0
      %v458 = vadd.f32 0.0, %v457
      %v459 = vpop.f32.mrf.mxu0
      %v460 = vadd.f32 0.0, %v459
      %461 = vmatmul.bf16.gmra.mxu0 %v384
      %v462 = vpop.f32.mrf.mxu0
      %v463 = vadd.f32 0.0, %v462
      %v464 = vpop.f32.mrf.mxu0
      %v465 = vadd.f32 0.0, %v464
      %466 = vmatmul.bf16.gmra.mxu0 %v387
      %v467 = vpop.f32.mrf.mxu0
      %v468 = vadd.f32 0.0, %v467
      %v469 = vpop.f32.mrf.mxu0
      %v470 = vadd.f32 0.0, %v469
      %471 = vmatmul.bf16.gmra.mxu0 %v390
      %v472 = vpop.f32.mrf.mxu0
      %v473 = vadd.f32 0.0, %v472
      %v474 = vpop.f32.mrf.mxu0
      %v475 = vadd.f32 0.0, %v474
      %476 = vmatmul.bf16.gmra.mxu0 %v393
      %v477 = vpop.f32.mrf.mxu0
      %v478 = vadd.f32 0.0, %v477
      %v479 = vpop.f32.mrf.mxu0
      %v480 = vadd.f32 0.0, %v479
      %481 = vmatmul.bf16.gmra.mxu0 %v396
      %v482 = vpop.f32.mrf.mxu0
      %v483 = vadd.f32 0.0, %v482
      %v484 = vpop.f32.mrf.mxu0
      %v485 = vadd.f32 0.0, %v484
      %486 = vmatmul.bf16.gmra.mxu0 %v399
      %v487 = vpop.f32.mrf.mxu0
      %v488 = vadd.f32 0.0, %v487
      %v489 = vpop.f32.mrf.mxu0
      %v490 = vadd.f32 0.0, %v489
      %491 = vmatmul.bf16.gmra.mxu0 %v402
      %v492 = vpop.f32.mrf.mxu0
      %v493 = vadd.f32 0.0, %v492
      %v494 = vpop.f32.mrf.mxu0
      %v495 = vadd.f32 0.0, %v494
      %496 = vdwg.mxu0
      %497 = vst [vmem:[%s199] sm:$0xff] %v418
      %498 = vst [vmem:[%s199 + $0x8] sm:$0xff] %v420
      %499 = vst [vmem:[%s199 + $0x10] sm:$0xff] %v423
      %500 = vst [vmem:[%s199 + $0x18] sm:$0xff] %v425
      %501 = vst [vmem:[%s199 + $0x20] sm:$0xff] %v428
      %502 = vst [vmem:[%s199 + $0x28] sm:$0xff] %v430
      %503 = vst [vmem:[%s199 + $0x30] sm:$0xff] %v433
      %504 = vst [vmem:[%s199 + $0x38] sm:$0xff] %v435
      %505 = vst [vmem:[%s199 + $0x40] sm:$0xff] %v438
      %506 = vst [vmem:[%s199 + $0x48] sm:$0xff] %v440
      %507 = vst [vmem:[%s199 + $0x50] sm:$0xff] %v443
      %508 = vst [vmem:[%s199 + $0x58] sm:$0xff] %v445
      %509 = vst [vmem:[%s199 + $0x60] sm:$0xff] %v448
      %510 = vst [vmem:[%s199 + $0x68] sm:$0xff] %v450
      %511 = vst [vmem:[%s199 + $0x70] sm:$0xff] %v453
      %512 = vst [vmem:[%s199 + $0x78] sm:$0xff] %v455
      %513 = vst [vmem:[%s199 + $0x80] sm:$0xff] %v458
      %514 = vst [vmem:[%s199 + $0x88] sm:$0xff] %v460
      %515 = vst [vmem:[%s199 + $0x90] sm:$0xff] %v463
      %516 = vst [vmem:[%s199 + $0x98] sm:$0xff] %v465
      %517 = vst [vmem:[%s199 + $0xa0] sm:$0xff] %v468
      %518 = vst [vmem:[%s199 + $0xa8] sm:$0xff] %v470
      %519 = vst [vmem:[%s199 + $0xb0] sm:$0xff] %v473
      %520 = vst [vmem:[%s199 + $0xb8] sm:$0xff] %v475
      %521 = vst [vmem:[%s199 + $0xc0] sm:$0xff] %v478
      %522 = vst [vmem:[%s199 + $0xc8] sm:$0xff] %v480
      %523 = vst [vmem:[%s199 + $0xd0] sm:$0xff] %v483
      %524 = vst [vmem:[%s199 + $0xd8] sm:$0xff] %v485
      %525 = vst [vmem:[%s199 + $0xe0] sm:$0xff] %v488
      %526 = vst [vmem:[%s199 + $0xe8] sm:$0xff] %v490
      %527 = vst [vmem:[%s199 + $0xf0] sm:$0xff] %v493
      %528 = vst [vmem:[%s199 + $0xf8] sm:$0xff] %v495
      %s529 = smul.u32 32, %s15
      %p530 = scmp.lt.s32.totalorder %s529, 63
      %s531 = scalar_select %p530, %s529, 63
      %s532 = smul.addr %s531, 8
      %s533 = scalar_lea.vmem %s4, %s532
      // Predicated region
      $region37: #{decoder_forward.18} parent=35 // pred_check
        %p534 = pneg %p122
      $region38: #{decoder_forward.18} parent=35 // pred_check_branch
        %536 = sbr.rel (%p534) target = $region40
      $region39: #{decoder_forward.18} parent=35 // pred_region
        %s537 = smul.u32 32, %s15
      $region40: #{decoder_forward.18} parent=35 // pred_fallthru
        _
    $region36: #{decoder_forward.18} parent=5 // pred_fallthru
      _
    %p538 = scmp.le.s32.totalorder 2, %s10
    // Predicated region
    $region41: #{decoder_forward.18} parent=5 // pred_check
      %p539 = pneg %p538
    $region42: #{decoder_forward.18} parent=5 // pred_check_branch
      %541 = sbr.rel (%p539) target = $region44
    $region43: #{decoder_forward.18} parent=5 // pred_region
      %s542 = ssub.s32 %s10, 2
      // Predicated region
      $region45: #{decoder_forward.18} parent=43 // pred_check
        %p543 = pneg %p128
      $region46: #{decoder_forward.18} parent=43 // pred_check_branch
        %545 = sbr.rel (%p543) target = $region48
      $region47: #{decoder_forward.18} parent=43 // pred_region
        %s546 = smul.u32 32, %s16
        %p547 = scmp.lt.s32.totalorder %s546, 63
        %s548 = scalar_select %p547, %s546, 63
        %s549 = smul.addr %s548, 8
        %s550 = scalar_lea.vmem %s4, %s549
      $region48: #{decoder_forward.18} parent=43 // pred_fallthru
        _
    $region44: #{decoder_forward.18} parent=5 // pred_fallthru
      _
  $region6: #{decoder_forward.18} parent=0 // loop_footer
    %s14 = sadd.s32 1, %s10
  $region7: #{decoder_forward.18} parent=0 // loop_footer_branch
    %9 = sbr.rel target = $region3
  $region8: #{decoder_forward.18} parent=0 // loop_exit
    _

// kernel: tile.8
$region0: #{tile.8}
  #allocation0 [shape = 's32[1]{0}', space=sflag, size = 0x4, scoped, tag = 'scoped memory for tile.8']
  %s0 = inlined_call_operand.vmem [shape: f32[3], index: 0, kind: input, shape index: {}]
  %s1 = inlined_call_operand.vmem [shape: f32[32,3], index: 1, kind: output, shape index: {}]
  // Predicated region
  $region2: #{tile.8} parent=0 // pred_check
    _
  $region3: #{tile.8} parent=0 // pred_check_branch
    %3 = sbr.rel (0) target = $region5
  $region4: #{tile.8} parent=0 // pred_region
    _
  $region5: #{tile.8} parent=0 // pred_fallthru
    _
  %v4 = vld [vmem:[%s0] ss:$0 sm:$0xff]
  %5 = vst [vmem:[%s1] sm:$0xff] %v4
  %s6 = scalar_lea.vmem %s1, 8
  %7 = vst [vmem:[%s6] sm:$0xff] %v4
  %s8 = scalar_lea.vmem %s1, 16
  %9 = vst [vmem:[%s8] sm:$0xff] %v4
  %s10 = scalar_lea.vmem %s1, 24
  %11 = vst [vmem:[%s10] sm:$0xff] %v4

// kernel: tile.9
$region0: #{tile.9}
  %s0 = inlined_call_operand.vmem [shape: f32[32,3], index: 0, kind: input, shape index: {}]
  %s1 = inlined_call_operand.vmem [shape: f32[1,96], index: 1, kind: output, shape index: {}]
  $region1: #{tile.9} parent=0
    #allocation0 [shape = 'u8[4096]{0}', space=vmem, size = 0x1000, scoped, tag = 'scoped mem for output reshape']
    %v2 = vld [vmem:[%s0] sm:$0x1]
    %vm3 = vcmask 23552
    %4 = vst.msk [vmem:[#allocation0] sm:$0x1] %vm3, %v2
    %s5 = scalar_lea.vmem %s0, 31
    %v6 = vld [vmem:[%s5] sm:$0x1]
    %7 = vrot.lane.b32.xlu0 %v6, 93
    %v8 = vpop.permute.xlu0 %7
    %vm9 = vcmask 786152
    %10 = vst.msk [vmem:[#allocation0] sm:$0x1] %vm9, %v8
    %s11 = scalar_lea.vmem %s0, 30
    %v12 = vld [vmem:[%s11] sm:$0x1]
    %13 = vrot.lane.b32.xlu0 %v12, 90
    %v14 = vpop.permute.xlu0 %13
    %vm15 = vcmask 761552
    %16 = vst.msk [vmem:[#allocation0] sm:$0x1] %vm15, %v14
    %s17 = scalar_lea.vmem %s0, 29
    %v18 = vld [vmem:[%s17] sm:$0x1]
    %19 = vrot.lane.b32.xlu0 %v18, 87
    %v20 = vpop.permute.xlu0 %19
    %vm21 = vcmask 736952
    %22 = vst.msk [vmem:[#allocation0] sm:$0x1] %vm21, %v20
    %s23 = scalar_lea.vmem %s0, 28
    %v24 = vld [vmem:[%s23] sm:$0x1]
    %25 = vrot.lane.b32.xlu0 %v24, 84
    %v26 = vpop.permute.xlu0 %25
    %vm27 = vcmask 712352
    %28 = vst.msk [vmem:[#allocation0] sm:$0x1] %vm27, %v26
    %s29 = scalar_lea.vmem %s0, 27
    %v30 = vld [vmem:[%s29] sm:$0x1]
    %31 = vrot.lane.b32.xlu0 %v30, 81
    %v32 = vpop.permute.xlu0 %31
    %vm33 = vcmask 687752
    %34 = vst.msk [vmem:[#allocation0] sm:$0x1] %vm33, %v32
    %s35 = scalar_lea.vmem %s0, 26
    %v36 = vld [vmem:[%s35] sm:$0x1]
    %37 = vrot.lane.b32.xlu0 %v36, 78
    %v38 = vpop.permute.xlu0 %37
    %vm39 = vcmask 663152
    %40 = vst.msk [vmem:[#allocation0] sm:$0x1] %vm39, %v38
    %s41 = scalar_lea.vmem %s0, 25
    %v42 = vld [vmem:[%s41] sm:$0x1]
    %43 = vrot.lane.b32.xlu0 %v42, 75
    %v44 = vpop.permute.xlu0 %43
    %vm45 = vcmask 638552
    %46 = vst.msk [vmem:[#allocation0] sm:$0x1] %vm45, %v44
    %s47 = scalar_lea.vmem %s0, 24
    %v48 = vld [vmem:[%s47] sm:$0x1]
    %49 = vrot.lane.b32.xlu0 %v48, 72
    %v50 = vpop.permute.xlu0 %49
    %vm51 = vcmask 613952
    %52 = vst.msk [vmem:[#allocation0] sm:$0x1] %vm51, %v50
    %s53 = scalar_lea.vmem %s0, 23
    %v54 = vld [vmem:[%s53] sm:$0x1]
    %55 = vrot.lane.b32.xlu0 %v54, 69
    %v56 = vpop.permute.xlu0 %55
    %vm57 = vcmask 589352
    %58 = vst.msk [vmem:[#allocation0] sm:$0x1] %vm57, %v56
    %s59 = scalar_lea.vmem %s0, 22
    %v60 = vld [vmem:[%s59] sm:$0x1]
    %61 = vrot.lane.b32.xlu0 %v60, 66
    %v62 = vpop.permute.xlu0 %61
    %vm63 = vcmask 564752
    %64 = vst.msk [vmem:[#allocation0] sm:$0x1] %vm63, %v62
    %s65 = scalar_lea.vmem %s0, 21
    %v66 = vld [vmem:[%s65] sm:$0x1]
    %67 = vrot.lane.b32.xlu0 %v66, 63
    %v68 = vpop.permute.xlu0 %67
    %vm69 = vcmask 540152
    %70 = vst.msk [vmem:[#allocation0] sm:$0x1] %vm69, %v68
    %s71 = scalar_lea.vmem %s0, 20
    %v72 = vld [vmem:[%s71] sm:$0x1]
    %73 = vrot.lane.b32.xlu0 %v72, 60
    %v74 = vpop.permute.xlu0 %73
    %vm75 = vcmask 515552
    %76 = vst.msk [vmem:[#allocation0] sm:$0x1] %vm75, %v74
    %s77 = scalar_lea.vmem %s0, 19
    %v78 = vld [vmem:[%s77] sm:$0x1]
    %79 = vrot.lane.b32.xlu0 %v78, 57
    %v80 = vpop.permute.xlu0 %79
    %vm81 = vcmask 490952
    %82 = vst.msk [vmem:[#allocation0] sm:$0x1] %vm81, %v80
    %s83 = scalar_lea.vmem %s0, 18
    %v84 = vld [vmem:[%s83] sm:$0x1]
    %85 = vrot.lane.b32.xlu0 %v84, 54
    %v86 = vpop.permute.xlu0 %85
    %vm87 = vcmask 466352
    %88 = vst.msk [vmem:[#allocation0] sm:$0x1] %vm87, %v86
    %s89 = scalar_lea.vmem %s0, 17
    %v90 = vld [vmem:[%s89] sm:$0x1]
    %91 = vrot.lane.b32.xlu0 %v90, 51
    %v92 = vpop.permute.xlu0 %91
    %vm93 = vcmask 441752
    %94 = vst.msk [vmem:[#allocation0] sm:$0x1] %vm93, %v92
    %s95 = scalar_lea.vmem %s0, 16
    %v96 = vld [vmem:[%s95] sm:$0x1]
    %97 = vrot.lane.b32.xlu0 %v96, 48
    %v98 = vpop.permute.xlu0 %97
    %vm99 = vcmask 417152
    %100 = vst.msk [vmem:[#allocation0] sm:$0x1] %vm99, %v98
    %s101 = scalar_lea.vmem %s0, 15
    %v102 = vld [vmem:[%s101] sm:$0x1]
    %103 = vrot.lane.b32.xlu0 %v102, 45
    %v104 = vpop.permute.xlu0 %103
    %vm105 = vcmask 392552
    %106 = vst.msk [vmem:[#allocation0] sm:$0x1] %vm105, %v104
    %s107 = scalar_lea.vmem %s0, 14
    %v108 = vld [vmem:[%s107] sm:$0x1]
    %109 = vrot.lane.b32.xlu0 %v108, 42
    %v110 = vpop.permute.xlu0 %109
    %vm111 = vcmask 367952
    %112 = vst.msk [vmem:[#allocation0] sm:$0x1] %vm111, %v110
    %s113 = scalar_lea.vmem %s0, 13
    %v114 = vld [vmem:[%s113] sm:$0x1]
    %115 = vrot.lane.b32.xlu0 %v114, 39
    %v116 = vpop.permute.xlu0 %115
    %vm117 = vcmask 343352
    %118 = vst.msk [vmem:[#allocation0] sm:$0x1] %vm117, %v116
    %s119 = scalar_lea.vmem %s0, 12
    %v120 = vld [vmem:[%s119] sm:$0x1]
    %121 = vrot.lane.b32.xlu0 %v120, 36
    %v122 = vpop.permute.xlu0 %121
    %vm123 = vcmask 318752
    %124 = vst.msk [vmem:[#allocation0] sm:$0x1] %vm123, %v122
    %s125 = scalar_lea.vmem %s0, 11
    %v126 = vld [vmem:[%s125] sm:$0x1]
    %127 = vrot.lane.b32.xlu0 %v126, 33
    %v128 = vpop.permute.xlu0 %127
    %vm129 = vcmask 294152
    %130 = vst.msk [vmem:[#allocation0] sm:$0x1] %vm129, %v128
    %s131 = scalar_lea.vmem %s0, 10
    %v132 = vld [vmem:[%s131] sm:$0x1]
    %133 = vrot.lane.b32.xlu0 %v132, 30
    %v134 = vpop.permute.xlu0 %133
    %vm135 = vcmask 269552
    %136 = vst.msk [vmem:[#allocation0] sm:$0x1] %vm135, %v134
    %s137 = scalar_lea.vmem %s0, 9
    %v138 = vld [vmem:[%s137] sm:$0x1]
    %139 = vrot.lane.b32.xlu0 %v138, 27
    %v140 = vpop.permute.xlu0 %139
    %vm141 = vcmask 244952
    %142 = vst.msk [vmem:[#allocation0] sm:$0x1] %vm141, %v140
    %s143 = scalar_lea.vmem %s0, 8
    %v144 = vld [vmem:[%s143] sm:$0x1]
    %145 = vrot.lane.b32.xlu0 %v144, 24
    %v146 = vpop.permute.xlu0 %145
    %vm147 = vcmask 220352
    %148 = vst.msk [vmem:[#allocation0] sm:$0x1] %vm147, %v146
    %s149 = scalar_lea.vmem %s0, 7
    %v150 = vld [vmem:[%s149] sm:$0x1]
    %151 = vrot.lane.b32.xlu0 %v150, 21
    %v152 = vpop.permute.xlu0 %151
    %vm153 = vcmask 195752
    %154 = vst.msk [vmem:[#allocation0] sm:$0x1] %vm153, %v152
    %s155 = scalar_lea.vmem %s0, 6
    %v156 = vld [vmem:[%s155] sm:$0x1]
    %157 = vrot.lane.b32.xlu0 %v156, 18
    %v158 = vpop.permute.xlu0 %157
    %vm159 = vcmask 171152
    %160 = vst.msk [vmem:[#allocation0] sm:$0x1] %vm159, %v158
    %s161 = scalar_lea.vmem %s0, 5
    %v162 = vld [vmem:[%s161] sm:$0x1]
    %163 = vrot.lane.b32.xlu0 %v162, 15
    %v164 = vpop.permute.xlu0 %163
    %vm165 = vcmask 146552
    %166 = vst.msk [vmem:[#allocation0] sm:$0x1] %vm165, %v164
    %s167 = scalar_lea.vmem %s0, 4
    %v168 = vld [vmem:[%s167] sm:$0x1]
    %169 = vrot.lane.b32.xlu0 %v168, 12
    %v170 = vpop.permute.xlu0 %169
    %vm171 = vcmask 121952
    %172 = vst.msk [vmem:[#allocation0] sm:$0x1] %vm171, %v170
    %s173 = scalar_lea.vmem %s0, 3
    %v174 = vld [vmem:[%s173] sm:$0x1]
    %175 = vrot.lane.b32.xlu0 %v174, 9
    %v176 = vpop.permute.xlu0 %175
    %vm177 = vcmask 97352
    %178 = vst.msk [vmem:[#allocation0] sm:$0x1] %vm177, %v176
    %s179 = scalar_lea.vmem %s0, 2
    %v180 = vld [vmem:[%s179] sm:$0x1]
    %181 = vrot.lane.b32.xlu0 %v180, 6
    %v182 = vpop.permute.xlu0 %181
    %vm183 = vcmask 72752
    %184 = vst.msk [vmem:[#allocation0] sm:$0x1] %vm183, %v182
    %s185 = scalar_lea.vmem %s0, 1
    %v186 = vld [vmem:[%s185] sm:$0x1]
    %187 = vrot.lane.b32.xlu0 %v186, 3
    %v188 = vpop.permute.xlu0 %187
    %vm189 = vcmask 48152
    %190 = vst.msk [vmem:[#allocation0] sm:$0x1] %vm189, %v188
    %s192 = ssub.s32 2, 1
    %v193 = vld [vmem:[#allocation0] sm:%s192]
    %s195 = ssub.s32 2, 1
    %196 = vst [vmem:[%s1] sm:%s195] %v193

// kernel: decoder_forward.19
$region0: #{decoder_forward.19}
  #allocation0 [shape = 'u32[]', space=smem, size = 0x4, offset = 0x4, fixed_abs, tag = 'smem constant byte address 0x4 - core index']
  #allocation1 [shape = 'u32[72,128]{1,0:T(1,128)}', space=vmem, size = 0x9000, scoped, tag = 'internal scratch']
  %s0 = inlined_call_operand.vmem [shape: f32[64,96], index: 0, kind: input, shape index: {}]
  %s1 = inlined_call_operand.vmem [shape: f32[1,96], index: 1, kind: input, shape index: {}]
  %s2 = inlined_call_operand.vmem [shape: f32[64,96], index: 2, kind: output, shape index: {}]
  %s3 = sld [smem:[#allocation0]]
  $region18: #{decoder_forward.19} parent=0
    _
  %s5 = ssub.s32 1, %s3
  %s6 = scalar_select 0, %s5, %s3
  // Predicated region
  $region2: #{decoder_forward.19} parent=0 // pred_check
    _
  $region3: #{decoder_forward.19} parent=0 // pred_check_branch
    %8 = sbr.rel (0) target = $region5
  $region4: #{decoder_forward.19} parent=0 // pred_region
    _
  $region5: #{decoder_forward.19} parent=0 // pred_fallthru
    _
  // Predicated region
  $region6: #{decoder_forward.19} parent=0 // pred_check
    _
  $region7: #{decoder_forward.19} parent=0 // pred_check_branch
    %10 = sbr.rel (0) target = $region9
  $region8: #{decoder_forward.19} parent=0 // pred_region
    _
  $region9: #{decoder_forward.19} parent=0 // pred_fallthru
    _
  %v11 = vld [vmem:[%s0] sm:$0xff]
  %v12 = vld [vmem:[%s0 + $0x8] sm:$0xff]
  %v13 = vld [vmem:[%s0 + $0x10] sm:$0xff]
  %v14 = vld [vmem:[%s0 + $0x18] sm:$0xff]
  %v15 = vld [vmem:[%s0 + $0x20] sm:$0xff]
  %v16 = vld [vmem:[%s0 + $0x28] sm:$0xff]
  %v17 = vld [vmem:[%s0 + $0x30] sm:$0xff]
  %v18 = vld [vmem:[%s0 + $0x38] sm:$0xff]
  %v19 = vld [vmem:[%s1] sm:$0x1]
  %v21 = vperm.slane %v19, 0
  %v23 = vadd.f32 %v11, %v21
  %v24 = vadd.f32 %v12, %v21
  %v25 = vadd.f32 %v13, %v21
  %v26 = vadd.f32 %v14, %v21
  %v27 = vadd.f32 %v15, %v21
  %v28 = vadd.f32 %v16, %v21
  %v29 = vadd.f32 %v17, %v21
  %v30 = vadd.f32 %v18, %v21
  %v31 = vtanh.pop %v23
  %v32 = vtanh.pop %v24
  %v33 = vtanh.pop %v25
  %v34 = vtanh.pop %v26
  %v35 = vtanh.pop %v27
  %v36 = vtanh.pop %v28
  %v37 = vtanh.pop %v29
  %v38 = vtanh.pop %v30
  %vm39 = vcmask 785408
  %40 = vst.msk [vmem:[%s2] sm:$0xff] %vm39, %v31
  %41 = vst.msk [vmem:[%s2 + $0x8] sm:$0xff] %vm39, %v32
  %42 = vst.msk [vmem:[%s2 + $0x10] sm:$0xff] %vm39, %v33
  %43 = vst.msk [vmem:[%s2 + $0x18] sm:$0xff] %vm39, %v34
  %44 = vst.msk [vmem:[%s2 + $0x20] sm:$0xff] %vm39, %v35
  %45 = vst.msk [vmem:[%s2 + $0x28] sm:$0xff] %vm39, %v36
  %46 = vst.msk [vmem:[%s2 + $0x30] sm:$0xff] %vm39, %v37
  %47 = vst.msk [vmem:[%s2 + $0x38] sm:$0xff] %vm39, %v38
  // Predicated region
  $region10: #{decoder_forward.19} parent=0 // pred_check
    _
  $region11: #{decoder_forward.19} parent=0 // pred_check_branch
    %49 = sbr.rel (0) target = $region13
  $region12: #{decoder_forward.19} parent=0 // pred_region
    _
  $region13: #{decoder_forward.19} parent=0 // pred_fallthru
    _
  // Predicated region
  $region14: #{decoder_forward.19} parent=0 // pred_check
    _
  $region15: #{decoder_forward.19} parent=0 // pred_check_branch
    %51 = sbr.rel (0) target = $region17
  $region16: #{decoder_forward.19} parent=0 // pred_region
    _
  $region17: #{decoder_forward.19} parent=0 // pred_fallthru
    _

</llo_original>
